<compile_context>
chip_gen: v7x
topology: tpu7x:2x2x1
jax: 0.10.0
libtpu: 0.0.40
codegen_flags: <defaults>
</compile_context>

<pallas_src>
import jax
import jax.numpy as jnp
from jax.experimental import pallas as pl
from jax.experimental.pallas import tpu as pltpu

INPUT_DIM = 512
HIDDEN1 = 512
HIDDEN2 = 256
OUTPUT_DIM = 256


def _choose_tile_b(B):
    """Batch-aware batch-tile size.

    * Large batches: 512-1024 rows to amortize per-grid-step overhead and make
      the x/out DMAs bigger and more efficient (v6e/v7x).
    * Small batches (<=256): split into ~two tiles (rounded up to the 8-row
      sublane granule) so the "parallel" grid axis lands on both v7x
      TensorCores instead of leaving one idle.
    """
    if B >= 4096:
        return 1024
    if B >= 1024:
        return 512
    if B > 256:
        return 256
    half = -(-B // 2)                  # ceil(B / 2)
    return max(8, -(-half // 8) * 8)   # round up to sublane granule (8)


def qnetwork_kernel(x_ref, w1_ref, b1_ref, w2_ref, b2_ref, w3_ref, b3_ref,
                    o_ref, h1_ref, h2_ref):
    # x arrives as f32 straight from HBM; cast to bf16 in-kernel so the wrapper
    # never materializes a bf16 copy of x in HBM.
    x = x_ref[...].astype(jnp.bfloat16)

    # Layer 1: (TILE_B, 512) bf16 @ (512, 512) bf16 -> f32 accumulate
    h1 = jnp.dot(x, w1_ref[...], preferred_element_type=jnp.float32)
    h1 = jnp.maximum(h1 + b1_ref[...], 0.0)
    h1_ref[...] = h1.astype(jnp.bfloat16)          # stage in VMEM as bf16

    # Layer 2: (TILE_B, 512) bf16 @ (512, 256) bf16 -> f32 accumulate
    h2 = jnp.dot(h1_ref[...], w2_ref[...], preferred_element_type=jnp.float32)
    h2 = jnp.maximum(h2 + b2_ref[...], 0.0)
    h2_ref[...] = h2.astype(jnp.bfloat16)          # stage in VMEM as bf16

    # Layer 3: (TILE_B, 256) bf16 @ (256, 256) bf16 -> f32 accumulate
    out = jnp.dot(h2_ref[...], w3_ref[...], preferred_element_type=jnp.float32)
    o_ref[...] = out + b3_ref[...]


def qnetwork_forward(x, params):
    """Fused QNetwork forward.

    x: (B, 512) float32
    params (already prepared, see prepare_params):
        w1 (512,512) bf16, b1 (1,512) f32, w2 (512,256) bf16, b2 (1,256) f32,
        w3 (256,256) bf16, b3 (1,256) f32  -- weights stored (in, out).
    Returns (B, 256) float32.
    """
    B = x.shape[0]
    tile_b = _choose_tile_b(B)
    n_tiles = pl.cdiv(B, tile_b)   # ragged last block: writes past B are masked

    resident = lambda shape: pl.BlockSpec(shape, lambda i: (0,) * len(shape))

    return pl.pallas_call(
        qnetwork_kernel,
        out_shape=jax.ShapeDtypeStruct((B, OUTPUT_DIM), jnp.float32),
        grid=(n_tiles,),
        in_specs=[
            pl.BlockSpec((tile_b, INPUT_DIM), lambda i: (i, 0)),   # x tile (f32)
            resident((INPUT_DIM, HIDDEN1)),                        # w1 (bf16)
            resident((1, HIDDEN1)),                                # b1 (f32)
            resident((HIDDEN1, HIDDEN2)),                          # w2 (bf16)
            resident((1, HIDDEN2)),                                # b2 (f32)
            resident((HIDDEN2, OUTPUT_DIM)),                       # w3 (bf16)
            resident((1, OUTPUT_DIM)),                             # b3 (f32)
        ],
        out_specs=pl.BlockSpec((tile_b, OUTPUT_DIM), lambda i: (i, 0)),
        scratch_shapes=[
            pltpu.VMEM((tile_b, HIDDEN1), jnp.bfloat16),   # h1 staging
            pltpu.VMEM((tile_b, HIDDEN2), jnp.bfloat16),   # h2 staging
        ],
        compiler_params=pltpu.CompilerParams(
            dimension_semantics=("parallel",)),             # megacore on v7x
    )(x, params["w1"], params["b1"], params["w2"], params["b2"],
      params["w3"], params["b3"])


def init_params(key):
    """Deterministic f32 init mimicking PyTorch nn.Linear default U(-1/sqrt(fan_in), ...)."""
    ks = jax.random.split(key, 6)

    def linear(kw, kb, fan_in, fan_out):
        bound = 1.0 / jnp.sqrt(fan_in)
        # stored as (in, out) == transpose of PyTorch's (out, in) weight
        w = jax.random.uniform(kw, (fan_in, fan_out), jnp.float32, -bound, bound)
        b = jax.random.uniform(kb, (1, fan_out), jnp.float32, -bound, bound)
        return w, b

    w1, b1 = linear(ks[0], ks[1], INPUT_DIM, HIDDEN1)
    w2, b2 = linear(ks[2], ks[3], HIDDEN1, HIDDEN2)
    w3, b3 = linear(ks[4], ks[5], HIDDEN2, OUTPUT_DIM)
    return {"w1": w1, "b1": b1, "w2": w2, "b2": b2, "w3": w3, "b3": b3}


def prepare_params(params_f32):
    """One-time conversion of matmul weights to bf16 (kept out of the hot path)."""
    p = dict(params_f32)
    for k in ("w1", "w2", "w3"):
        p[k] = params_f32[k].astype(jnp.bfloat16)
    return p


def qnetwork_ref_f32(x, p):
    """Pure-f32 JAX reference of the PyTorch forward."""
    h1 = jnp.maximum(x @ p["w1"] + p["b1"], 0.0)
    h2 = jnp.maximum(h1 @ p["w2"] + p["b2"], 0.0)
    return h2 @ p["w3"] + p["b3"]


def qnetwork_ref_bf16(x, p):
    """Reference mirroring the kernel's bf16 matmul-inputs / f32-accum path."""
    xb = x.astype(jnp.bfloat16)
    w1 = p["w1"].astype(jnp.bfloat16)
    w2 = p["w2"].astype(jnp.bfloat16)
    w3 = p["w3"].astype(jnp.bfloat16)
    h1 = jnp.maximum(
        jnp.dot(xb, w1, preferred_element_type=jnp.float32) + p["b1"], 0.0)
    h2 = jnp.maximum(
        jnp.dot(h1.astype(jnp.bfloat16), w2,
                preferred_element_type=jnp.float32) + p["b2"], 0.0)
    return jnp.dot(h2.astype(jnp.bfloat16), w3,
                   preferred_element_type=jnp.float32) + p["b3"]


if __name__ == "__main__":
    key = jax.random.PRNGKey(0)
    k_param, k_x = jax.random.split(key)

    params_f32 = init_params(k_param)
    params = prepare_params(params_f32)   # one-time bf16 weight conversion

    # Small batch, not a multiple of the tile: exercises both the multi-tile
    # (2 grid steps -> both v7x cores) and the masked ragged-last-block path.
    batch = 10
    x = jax.random.normal(k_x, (batch, INPUT_DIM), jnp.float32)

    out = jax.block_until_ready(qnetwork_forward(x, params))

    assert out.shape == (batch, OUTPUT_DIM), out.shape
    ref_bf16 = qnetwork_ref_bf16(x, params_f32)
    assert jnp.allclose(out, ref_bf16, atol=2e-3, rtol=2e-3), \
        "mismatch vs bf16-path reference"
    ref_f32 = qnetwork_ref_f32(x, params_f32)
    assert jnp.allclose(out, ref_f32, atol=5e-2, rtol=5e-2), \
        "mismatch vs f32 reference"

    print("KERNEL_OK")
</pallas_src>

<mosaic_0001>
module attributes {stable_mosaic.version = 11 : i64} {
  func.func @qnetwork_kernel(%arg0: i32, %arg1: memref<8x512xf32, #tpu.memory_space<vmem>>, %arg2: memref<512x512xbf16, #tpu.memory_space<vmem>>, %arg3: memref<1x512xf32, #tpu.memory_space<vmem>>, %arg4: memref<512x256xbf16, #tpu.memory_space<vmem>>, %arg5: memref<1x256xf32, #tpu.memory_space<vmem>>, %arg6: memref<256x256xbf16, #tpu.memory_space<vmem>>, %arg7: memref<1x256xf32, #tpu.memory_space<vmem>>, %arg8: memref<8x256xf32, #tpu.memory_space<vmem>>, %arg9: memref<8x512xbf16, #tpu.memory_space<vmem>>, %arg10: memref<8x256xbf16, #tpu.memory_space<vmem>>) attributes {dimension_semantics = [#tpu.dimension_semantics<parallel>], iteration_bounds = array<i64: 2>, scalar_prefetch = 0 : i64, scratch_operands = 2 : i64, tpu.core_type = #tpu.core_type<tc>, window_params = [{transform_indices = @transform_0, window_bounds = array<i64: 8, 512>}, {pipeline_mode = #tpu.pipeline_mode<synchronous>, transform_indices = @transform_1, window_bounds = array<i64: 512, 512>}, {pipeline_mode = #tpu.pipeline_mode<synchronous>, transform_indices = @transform_2, window_bounds = array<i64: 1, 512>}, {pipeline_mode = #tpu.pipeline_mode<synchronous>, transform_indices = @transform_3, window_bounds = array<i64: 512, 256>}, {pipeline_mode = #tpu.pipeline_mode<synchronous>, transform_indices = @transform_4, window_bounds = array<i64: 1, 256>}, {pipeline_mode = #tpu.pipeline_mode<synchronous>, transform_indices = @transform_5, window_bounds = array<i64: 256, 256>}, {pipeline_mode = #tpu.pipeline_mode<synchronous>, transform_indices = @transform_6, window_bounds = array<i64: 1, 256>}, {transform_indices = @transform_7, window_bounds = array<i64: 8, 256>}]} {
    %c0 = arith.constant 0 : index
    %c0_0 = arith.constant 0 : index
    %0 = vector.load %arg1[%c0, %c0_0] : memref<8x512xf32, #tpu.memory_space<vmem>>, vector<8x512xf32>
    %1 = arith.truncf %0 : vector<8x512xf32> to vector<8x512xbf16>
    %c0_1 = arith.constant 0 : index
    %c0_2 = arith.constant 0 : index
    %2 = vector.load %arg2[%c0_1, %c0_2] : memref<512x512xbf16, #tpu.memory_space<vmem>>, vector<512x512xbf16>
    %cst = arith.constant dense<0.000000e+00> : vector<8x512xf32>
    %3 = tpu.matmul %1, %2, %cst {dimension_numbers = #tpu.dot_dimension_numbers<[1], [0], [0], [1], [0, 0, 1, 1], [], []>} : vector<8x512xbf16>, vector<512x512xbf16>, vector<8x512xf32> -> vector<8x512xf32>
    %c0_3 = arith.constant 0 : index
    %c0_4 = arith.constant 0 : index
    %4 = vector.load %arg3[%c0_3, %c0_4] : memref<1x512xf32, #tpu.memory_space<vmem>>, vector<1x512xf32>
    %5 = vector.broadcast %4 : vector<1x512xf32> to vector<8x512xf32>
    %6 = arith.addf %3, %5 : vector<8x512xf32>
    %cst_5 = arith.constant 0.000000e+00 : f32
    %7 = vector.broadcast %cst_5 : f32 to vector<8x512xf32>
    %8 = arith.maximumf %6, %7 : vector<8x512xf32>
    %9 = arith.truncf %8 : vector<8x512xf32> to vector<8x512xbf16>
    %c0_6 = arith.constant 0 : index
    %c0_7 = arith.constant 0 : index
    %10 = vector.load %arg9[%c0_6, %c0_7] : memref<8x512xbf16, #tpu.memory_space<vmem>>, vector<8x512xbf16>
    tpu.vector_store %arg9[%c0_6, %c0_7], %9 {strides = array<i32>} : memref<8x512xbf16, #tpu.memory_space<vmem>>, vector<8x512xbf16>,
    %c0_8 = arith.constant 0 : index
    %c0_9 = arith.constant 0 : index
    %11 = vector.load %arg9[%c0_8, %c0_9] : memref<8x512xbf16, #tpu.memory_space<vmem>>, vector<8x512xbf16>
    %c0_10 = arith.constant 0 : index
    %c0_11 = arith.constant 0 : index
    %12 = vector.load %arg4[%c0_10, %c0_11] : memref<512x256xbf16, #tpu.memory_space<vmem>>, vector<512x256xbf16>
    %cst_12 = arith.constant dense<0.000000e+00> : vector<8x256xf32>
    %13 = tpu.matmul %11, %12, %cst_12 {dimension_numbers = #tpu.dot_dimension_numbers<[1], [0], [0], [1], [0, 0, 1, 1], [], []>} : vector<8x512xbf16>, vector<512x256xbf16>, vector<8x256xf32> -> vector<8x256xf32>
    %c0_13 = arith.constant 0 : index
    %c0_14 = arith.constant 0 : index
    %14 = vector.load %arg5[%c0_13, %c0_14] : memref<1x256xf32, #tpu.memory_space<vmem>>, vector<1x256xf32>
    %15 = vector.broadcast %14 : vector<1x256xf32> to vector<8x256xf32>
    %16 = arith.addf %13, %15 : vector<8x256xf32>
    %cst_15 = arith.constant 0.000000e+00 : f32
    %17 = vector.broadcast %cst_15 : f32 to vector<8x256xf32>
    %18 = arith.maximumf %16, %17 : vector<8x256xf32>
    %19 = arith.truncf %18 : vector<8x256xf32> to vector<8x256xbf16>
    %c0_16 = arith.constant 0 : index
    %c0_17 = arith.constant 0 : index
    %20 = vector.load %arg10[%c0_16, %c0_17] : memref<8x256xbf16, #tpu.memory_space<vmem>>, vector<8x256xbf16>
    tpu.vector_store %arg10[%c0_16, %c0_17], %19 {strides = array<i32>} : memref<8x256xbf16, #tpu.memory_space<vmem>>, vector<8x256xbf16>,
    %c0_18 = arith.constant 0 : index
    %c0_19 = arith.constant 0 : index
    %21 = vector.load %arg10[%c0_18, %c0_19] : memref<8x256xbf16, #tpu.memory_space<vmem>>, vector<8x256xbf16>
    %c0_20 = arith.constant 0 : index
    %c0_21 = arith.constant 0 : index
    %22 = vector.load %arg6[%c0_20, %c0_21] : memref<256x256xbf16, #tpu.memory_space<vmem>>, vector<256x256xbf16>
    %cst_22 = arith.constant dense<0.000000e+00> : vector<8x256xf32>
    %23 = tpu.matmul %21, %22, %cst_22 {dimension_numbers = #tpu.dot_dimension_numbers<[1], [0], [0], [1], [0, 0, 1, 1], [], []>} : vector<8x256xbf16>, vector<256x256xbf16>, vector<8x256xf32> -> vector<8x256xf32>
    %c0_23 = arith.constant 0 : index
    %c0_24 = arith.constant 0 : index
    %24 = vector.load %arg7[%c0_23, %c0_24] : memref<1x256xf32, #tpu.memory_space<vmem>>, vector<1x256xf32>
    %25 = vector.broadcast %24 : vector<1x256xf32> to vector<8x256xf32>
    %26 = arith.addf %23, %25 : vector<8x256xf32>
    %c0_25 = arith.constant 0 : index
    %c0_26 = arith.constant 0 : index
    %27 = vector.load %arg8[%c0_25, %c0_26] : memref<8x256xf32, #tpu.memory_space<vmem>>, vector<8x256xf32>
    tpu.vector_store %arg8[%c0_25, %c0_26], %26 {strides = array<i32>} : memref<8x256xf32, #tpu.memory_space<vmem>>, vector<8x256xf32>,
    return
  }
  func.func @transform_0(%arg0: i32) -> (i32, i32) {
    %c0_i32 = arith.constant 0 : i32
    %c0_i32_0 = arith.constant 0 : i32
    return %arg0, %c0_i32 : i32, i32
  }
  func.func @transform_1(%arg0: i32) -> (i32, i32) {
    %c0_i32 = arith.constant 0 : i32
    %c0_i32_0 = arith.constant 0 : i32
    %c0_i32_1 = arith.constant 0 : i32
    return %c0_i32, %c0_i32_0 : i32, i32
  }
  func.func @transform_2(%arg0: i32) -> (i32, i32) {
    %c0_i32 = arith.constant 0 : i32
    %c0_i32_0 = arith.constant 0 : i32
    %c0_i32_1 = arith.constant 0 : i32
    return %c0_i32, %c0_i32_0 : i32, i32
  }
  func.func @transform_3(%arg0: i32) -> (i32, i32) {
    %c0_i32 = arith.constant 0 : i32
    %c0_i32_0 = arith.constant 0 : i32
    %c0_i32_1 = arith.constant 0 : i32
    return %c0_i32, %c0_i32_0 : i32, i32
  }
  func.func @transform_4(%arg0: i32) -> (i32, i32) {
    %c0_i32 = arith.constant 0 : i32
    %c0_i32_0 = arith.constant 0 : i32
    %c0_i32_1 = arith.constant 0 : i32
    return %c0_i32, %c0_i32_0 : i32, i32
  }
  func.func @transform_5(%arg0: i32) -> (i32, i32) {
    %c0_i32 = arith.constant 0 : i32
    %c0_i32_0 = arith.constant 0 : i32
    %c0_i32_1 = arith.constant 0 : i32
    return %c0_i32, %c0_i32_0 : i32, i32
  }
  func.func @transform_6(%arg0: i32) -> (i32, i32) {
    %c0_i32 = arith.constant 0 : i32
    %c0_i32_0 = arith.constant 0 : i32
    %c0_i32_1 = arith.constant 0 : i32
    return %c0_i32, %c0_i32_0 : i32, i32
  }
  func.func @transform_7(%arg0: i32) -> (i32, i32) {
    %c0_i32 = arith.constant 0 : i32
    %c0_i32_0 = arith.constant 0 : i32
    return %arg0, %c0_i32 : i32, i32
  }
}

</mosaic_0001>

<llo_original>
// kernel: tpu_custom_call.1
$region0: #{tpu_custom_call.1}
  #allocation0 [shape = 'u32[]', space=smem, size = 0x4, offset = 0x4, fixed_abs, tag = 'smem constant byte address 0x4 - core index']
  #allocation1 [shape = 'u32[144,128]{1,0:T(1,128)}', space=vmem, size = 0x12000, scoped, tag = 'internal scratch']
  #allocation2 [shape = 'bf16[8,512]{1,0:T(8,128)(2,1)}', space=vmem, size = 0x2000, scoped, tag = 'scratch operand']
  #allocation3 [shape = 'bf16[8,256]{1,0:T(8,128)(2,1)}', space=vmem, size = 0x1000, scoped, tag = 'scratch operand']
  %s0 = inlined_call_operand.hbm [shape: f32[10,512], index: 0, kind: input, shape index: {}]
  %s1 = inlined_call_operand.hbm [shape: bf16[512,512], index: 1, kind: input, shape index: {}]
  %s2 = inlined_call_operand.vmem [shape: f32[1,512], index: 2, kind: input, shape index: {}]
  %s3 = inlined_call_operand.hbm [shape: bf16[512,256], index: 3, kind: input, shape index: {}]
  %s4 = inlined_call_operand.vmem [shape: f32[1,256], index: 4, kind: input, shape index: {}]
  %s5 = inlined_call_operand.hbm [shape: bf16[256,256], index: 5, kind: input, shape index: {}]
  %s6 = inlined_call_operand.vmem [shape: f32[1,256], index: 6, kind: input, shape index: {}]
  %s7 = inlined_call_operand.hbm [shape: f32[10,256], index: 7, kind: output, shape index: {}]
  %s8 = sld [smem:[#allocation0]]
  $region77: #{tpu_custom_call.1} parent=0
    _
  %s10 = ssub.s32 1, %s8
  %s11 = scalar_select 0, %s10, %s8
  $region1: #{tpu_custom_call.1} parent=0
    #allocation4 [shape = 'u8[32768]{0}', space=vmem, size = 0x8000, scoped, tag = 'input window, operand 0']
    #allocation5 [shape = 's32[2]{0}', space=sflag, size = 0x8, scoped, tag = 'scoped memory for tpu_custom_call.1']
    #allocation6 [shape = 's32[2]{0}', space=sflag, size = 0x8, scoped, tag = 'scoped memory for tpu_custom_call.1']
    #allocation7 [shape = 'u8[524288]{0}', space=vmem, size = 0x80000, scoped, tag = 'input window, operand 1, single buffered']
    #allocation8 [shape = 's32[1]{0}', space=sflag, size = 0x4, scoped, tag = 'scoped memory for tpu_custom_call.1']
    #allocation9 [shape = 'u8[262144]{0}', space=vmem, size = 0x40000, scoped, tag = 'input window, operand 3, single buffered']
    #allocation10 [shape = 'u8[131072]{0}', space=vmem, size = 0x20000, scoped, tag = 'input window, operand 5, single buffered']
    #allocation11 [shape = 's32[1]{0}', space=sflag, size = 0x4, scoped, tag = 'scoped memory for tpu_custom_call.1']
    #allocation12 [shape = 'u8[16384]{0}', space=vmem, size = 0x4000, scoped, tag = 'output window, operand 0']
    %12 = vsyncpa [#allocation5], 0
    %s13 = scalar_lea.sflag [#allocation5], 1
    %14 = vsyncpa %s13, 0
    %15 = vsyncpa [#allocation8], 0
    %16 = vsyncpa [#allocation11], 0
    %17 = vsyncpa [#allocation6], 0
    %s18 = scalar_lea.sflag [#allocation6], 1
    %19 = vsyncpa %s18, 0
    loop: start=0, step=1, limit=4
    $region2: #{tpu_custom_call.1} parent=1 // loop_pre_header
      _
    $region3: #{tpu_custom_call.1} parent=1 // loop_header
      %s21 = sphi 0, %s25
      %p22 = scmp.ge.s32.totalorder %s21, 4
      %s31 = sphi 0, %s33
      %s34 = sphi 0, %s31
      %s35 = sphi 0, %s34
      %s51 = sphi 0, %s35
      %s55 = sphi 0, %s55
      %s57 = sphi 0, %s55
      %s58 = sphi 0, %s57
      %s72 = sphi 0, %s58
      %s76 = sphi 0, %s76
      %s78 = sphi 0, %s76
      %s79 = sphi 0, %s78
      %s93 = sphi 0, %s79
      %s97 = sphi 0, %s97
      %s99 = sphi 0, %s97
      %s100 = sphi 0, %s99
      %s114 = sphi 0, %s100
      %s118 = sphi 0, %s118
      %s120 = sphi 0, %s118
      %s121 = sphi 0, %s120
      %s135 = sphi 0, %s121
      %s139 = sphi 0, %s139
      %s141 = sphi 0, %s139
      %s142 = sphi 0, %s141
      %s156 = sphi 0, %s142
      %s160 = sphi 0, %s160
      %s162 = sphi 0, %s160
      %s163 = sphi 0, %s162
      %s177 = sphi 0, %s163
      %s183 = sphi 0, %s185
      %s186 = sphi 0, %s183
      %s187 = sphi 0, %s186
      %s203 = sphi 0, %s187
    $region4: #{tpu_custom_call.1} parent=1 // loop_header_branch
      %24 = sbr.rel (%p22) target = $region8
    $region5: #{tpu_custom_call.1} parent=1 // loop_body
      %s26 = ssub.s32 %s21, 1
      %s27 = ssub.s32 %s21, 2
      %s28 = sadd.s32 %s21, 1
      %s29 = ssub.s32 %s21, %s28
      %p30 = scmp.eq.s32.totalorder %s29, 0
      %s32 = sadd.s32 %s31, 1
      %s33 = scalar_select %p30, %s31, %s32
      %p36 = pneg %p30
      %p37 = scmp.eq.s32.totalorder %s21, 1
      %p38 = por %p36, %p37
      %p39 = scmp.ne.s32.totalorder %s31, %s34
      %p40 = scmp.eq.s32.totalorder %s21, 0
      %p41 = por %p39, %p40
      %p42 = scmp.ne.s32.totalorder %s31, %s34
      %p43 = scmp.eq.s32.totalorder %s26, 1
      %p44 = por %p42, %p43
      %p45 = scmp.ne.s32.totalorder %s34, %s35
      %p46 = scmp.eq.s32.totalorder %s26, 0
      %p47 = por %p45, %p46
      %p48 = scmp.ne.s32.totalorder %s34, %s35
      %p49 = scmp.eq.s32.totalorder %s27, 1
      %p50 = por %p48, %p49
      %p52 = scmp.ne.s32.totalorder %s35, %s51
      %p53 = scmp.eq.s32.totalorder %s27, 0
      %p54 = por %p52, %p53
      %s56 = sadd.s32 %s55, 1
      %p59 = scmp.eq.s32.totalorder %s21, 1
      %p60 = scmp.ne.s32.totalorder %s55, %s57
      %p61 = scmp.eq.s32.totalorder %s21, 0
      %p62 = por %p60, %p61
      %p63 = scmp.ne.s32.totalorder %s55, %s57
      %p64 = scmp.eq.s32.totalorder %s26, 1
      %p65 = por %p63, %p64
      %p66 = scmp.ne.s32.totalorder %s57, %s58
      %p67 = scmp.eq.s32.totalorder %s26, 0
      %p68 = por %p66, %p67
      %p69 = scmp.ne.s32.totalorder %s57, %s58
      %p70 = scmp.eq.s32.totalorder %s27, 1
      %p71 = por %p69, %p70
      %p73 = scmp.ne.s32.totalorder %s58, %s72
      %p74 = scmp.eq.s32.totalorder %s27, 0
      %p75 = por %p73, %p74
      %s77 = sadd.s32 %s76, 1
      %p80 = scmp.eq.s32.totalorder %s21, 1
      %p81 = scmp.ne.s32.totalorder %s76, %s78
      %p82 = scmp.eq.s32.totalorder %s21, 0
      %p83 = por %p81, %p82
      %p84 = scmp.ne.s32.totalorder %s76, %s78
      %p85 = scmp.eq.s32.totalorder %s26, 1
      %p86 = por %p84, %p85
      %p87 = scmp.ne.s32.totalorder %s78, %s79
      %p88 = scmp.eq.s32.totalorder %s26, 0
      %p89 = por %p87, %p88
      %p90 = scmp.ne.s32.totalorder %s78, %s79
      %p91 = scmp.eq.s32.totalorder %s27, 1
      %p92 = por %p90, %p91
      %p94 = scmp.ne.s32.totalorder %s79, %s93
      %p95 = scmp.eq.s32.totalorder %s27, 0
      %p96 = por %p94, %p95
      %s98 = sadd.s32 %s97, 1
      %p101 = scmp.eq.s32.totalorder %s21, 1
      %p102 = scmp.ne.s32.totalorder %s97, %s99
      %p103 = scmp.eq.s32.totalorder %s21, 0
      %p104 = por %p102, %p103
      %p105 = scmp.ne.s32.totalorder %s97, %s99
      %p106 = scmp.eq.s32.totalorder %s26, 1
      %p107 = por %p105, %p106
      %p108 = scmp.ne.s32.totalorder %s99, %s100
      %p109 = scmp.eq.s32.totalorder %s26, 0
      %p110 = por %p108, %p109
      %p111 = scmp.ne.s32.totalorder %s99, %s100
      %p112 = scmp.eq.s32.totalorder %s27, 1
      %p113 = por %p111, %p112
      %p115 = scmp.ne.s32.totalorder %s100, %s114
      %p116 = scmp.eq.s32.totalorder %s27, 0
      %p117 = por %p115, %p116
      %s119 = sadd.s32 %s118, 1
      %p122 = scmp.eq.s32.totalorder %s21, 1
      %p123 = scmp.ne.s32.totalorder %s118, %s120
      %p124 = scmp.eq.s32.totalorder %s21, 0
      %p125 = por %p123, %p124
      %p126 = scmp.ne.s32.totalorder %s118, %s120
      %p127 = scmp.eq.s32.totalorder %s26, 1
      %p128 = por %p126, %p127
      %p129 = scmp.ne.s32.totalorder %s120, %s121
      %p130 = scmp.eq.s32.totalorder %s26, 0
      %p131 = por %p129, %p130
      %p132 = scmp.ne.s32.totalorder %s120, %s121
      %p133 = scmp.eq.s32.totalorder %s27, 1
      %p134 = por %p132, %p133
      %p136 = scmp.ne.s32.totalorder %s121, %s135
      %p137 = scmp.eq.s32.totalorder %s27, 0
      %p138 = por %p136, %p137
      %s140 = sadd.s32 %s139, 1
      %p143 = scmp.eq.s32.totalorder %s21, 1
      %p144 = scmp.ne.s32.totalorder %s139, %s141
      %p145 = scmp.eq.s32.totalorder %s21, 0
      %p146 = por %p144, %p145
      %p147 = scmp.ne.s32.totalorder %s139, %s141
      %p148 = scmp.eq.s32.totalorder %s26, 1
      %p149 = por %p147, %p148
      %p150 = scmp.ne.s32.totalorder %s141, %s142
      %p151 = scmp.eq.s32.totalorder %s26, 0
      %p152 = por %p150, %p151
      %p153 = scmp.ne.s32.totalorder %s141, %s142
      %p154 = scmp.eq.s32.totalorder %s27, 1
      %p155 = por %p153, %p154
      %p157 = scmp.ne.s32.totalorder %s142, %s156
      %p158 = scmp.eq.s32.totalorder %s27, 0
      %p159 = por %p157, %p158
      %s161 = sadd.s32 %s160, 1
      %p164 = scmp.eq.s32.totalorder %s21, 1
      %p165 = scmp.ne.s32.totalorder %s160, %s162
      %p166 = scmp.eq.s32.totalorder %s21, 0
      %p167 = por %p165, %p166
      %p168 = scmp.ne.s32.totalorder %s160, %s162
      %p169 = scmp.eq.s32.totalorder %s26, 1
      %p170 = por %p168, %p169
      %p171 = scmp.ne.s32.totalorder %s162, %s163
      %p172 = scmp.eq.s32.totalorder %s26, 0
      %p173 = por %p171, %p172
      %p174 = scmp.ne.s32.totalorder %s162, %s163
      %p175 = scmp.eq.s32.totalorder %s27, 1
      %p176 = por %p174, %p175
      %p178 = scmp.ne.s32.totalorder %s163, %s177
      %p179 = scmp.eq.s32.totalorder %s27, 0
      %p180 = por %p178, %p179
      %s181 = ssub.s32 %s21, %s28
      %p182 = scmp.eq.s32.totalorder %s181, 0
      %s184 = sadd.s32 %s183, 1
      %s185 = scalar_select %p182, %s183, %s184
      %p188 = pneg %p182
      %p189 = scmp.eq.s32.totalorder %s21, 1
      %p190 = por %p188, %p189
      %p191 = scmp.ne.s32.totalorder %s183, %s186
      %p192 = scmp.eq.s32.totalorder %s21, 0
      %p193 = por %p191, %p192
      %p194 = scmp.ne.s32.totalorder %s183, %s186
      %p195 = scmp.eq.s32.totalorder %s26, 1
      %p196 = por %p194, %p195
      %p197 = scmp.ne.s32.totalorder %s186, %s187
      %p198 = scmp.eq.s32.totalorder %s26, 0
      %p199 = por %p197, %p198
      %p200 = scmp.ne.s32.totalorder %s186, %s187
      %p201 = scmp.eq.s32.totalorder %s27, 1
      %p202 = por %p200, %p201
      %p204 = scmp.ne.s32.totalorder %s187, %s203
      %p205 = scmp.eq.s32.totalorder %s27, 0
      %p206 = por %p204, %p205
      %p207 = scmp.le.s32.totalorder 1, %s21
      %p208 = scmp.lt.s32.totalorder %s21, 3
      %p209 = pnand %p207, %p208
      %p210 = pneg %p209
      // Predicated region
      $region9: #{tpu_custom_call.1} parent=5 // pred_check
        _
      $region10: #{tpu_custom_call.1} parent=5 // pred_check_branch
        %212 = sbr.rel (%p209) target = $region12
      $region11: #{tpu_custom_call.1} parent=5 // pred_region
        %s213 = ssub.s32 %s21, 1
        // Predicated region
        $region13: #{tpu_custom_call.1} parent=11 // pred_check
          %p214 = pneg %p68
        $region14: #{tpu_custom_call.1} parent=11 // pred_check_branch
          %216 = sbr.rel (%p214) target = $region16
        $region15: #{tpu_custom_call.1} parent=11 // pred_region
          %s218 = ssub.s32 16384, 16384
          %219 = vsyncadd [#allocation8], %s218
          %s220 = sshll.u32 [#allocation7], 4
          %s221 = int_to_ptr.vmem [resolvable:$true] %s220
          %226 = dma.hbm_to_vmem [thread:$0]  %s1, 16384, %s221, [#allocation8], 256, 256, 16
        $region16: #{tpu_custom_call.1} parent=11 // pred_fallthru
          _
        // Predicated region
        $region17: #{tpu_custom_call.1} parent=11 // pred_check
          %p227 = pneg %p89
        $region18: #{tpu_custom_call.1} parent=11 // pred_check_branch
          %229 = sbr.rel (%p227) target = $region20
        $region19: #{tpu_custom_call.1} parent=11 // pred_region
          _
        $region20: #{tpu_custom_call.1} parent=11 // pred_fallthru
          _
        // Predicated region
        $region21: #{tpu_custom_call.1} parent=11 // pred_check
          %p230 = pneg %p110
        $region22: #{tpu_custom_call.1} parent=11 // pred_check_branch
          %232 = sbr.rel (%p230) target = $region24
        $region23: #{tpu_custom_call.1} parent=11 // pred_region
          %s234 = ssub.s32 8192, 8192
          %235 = vsyncadd [#allocation8], %s234
          %s236 = sshll.u32 [#allocation9], 4
          %s237 = int_to_ptr.vmem [resolvable:$true] %s236
          %242 = dma.hbm_to_vmem [thread:$0]  %s3, 8192, %s237, [#allocation8], 128, 128, 8
        $region24: #{tpu_custom_call.1} parent=11 // pred_fallthru
          _
        // Predicated region
        $region25: #{tpu_custom_call.1} parent=11 // pred_check
          %p243 = pneg %p131
        $region26: #{tpu_custom_call.1} parent=11 // pred_check_branch
          %245 = sbr.rel (%p243) target = $region28
        $region27: #{tpu_custom_call.1} parent=11 // pred_region
          _
        $region28: #{tpu_custom_call.1} parent=11 // pred_fallthru
          _
        // Predicated region
        $region29: #{tpu_custom_call.1} parent=11 // pred_check
          %p246 = pneg %p152
        $region30: #{tpu_custom_call.1} parent=11 // pred_check_branch
          %248 = sbr.rel (%p246) target = $region32
        $region31: #{tpu_custom_call.1} parent=11 // pred_region
          %s250 = ssub.s32 4096, 4096
          %251 = vsyncadd [#allocation11], %s250
          %s252 = sshll.u32 [#allocation10], 4
          %s253 = int_to_ptr.vmem [resolvable:$true] %s252
          %258 = dma.hbm_to_vmem [thread:$0]  %s5, 4096, %s253, [#allocation11], 128, 128, 8
        $region32: #{tpu_custom_call.1} parent=11 // pred_fallthru
          _
        // Predicated region
        $region33: #{tpu_custom_call.1} parent=11 // pred_check
          %p259 = pneg %p173
        $region34: #{tpu_custom_call.1} parent=11 // pred_check_branch
          %261 = sbr.rel (%p259) target = $region36
        $region35: #{tpu_custom_call.1} parent=11 // pred_region
          _
        $region36: #{tpu_custom_call.1} parent=11 // pred_fallthru
          _
      $region12: #{tpu_custom_call.1} parent=5 // pred_fallthru
        _
      %p262 = scmp.lt.s32.totalorder %s21, 2
      // Predicated region
      $region37: #{tpu_custom_call.1} parent=5 // pred_check
        %p263 = pneg %p262
      $region38: #{tpu_custom_call.1} parent=5 // pred_check_branch
        %265 = sbr.rel (%p263) target = $region40
      $region39: #{tpu_custom_call.1} parent=5 // pred_region
        // Predicated region
        $region41: #{tpu_custom_call.1} parent=39 // pred_check
          %p266 = pneg %p41
        $region42: #{tpu_custom_call.1} parent=39 // pred_check_branch
          %268 = sbr.rel (%p266) target = $region44
        $region43: #{tpu_custom_call.1} parent=39 // pred_region
          %s269 = sand.u32 %s31, 1
          %s270 = scalar_lea.sflag [#allocation5], %s269
          %s271 = sand.u32 %s31, 1
          %s272 = smul.addr %s271, 32
          %s273 = scalar_lea.vmem [#allocation4], %s272
          %s275 = ssub.s32 512, 512
          %276 = vsyncadd %s270, %s275
          %s277 = smul.addr %s21, 4
          %s278 = smul.addr %s277, 128
          %s279 = scalar_lea.hbm %s0, %s278
          %s281 = sshll.u32 %s273, 4
          %s282 = int_to_ptr.vmem [resolvable:$true] %s281
          %284 = dma.hbm_to_vmem [thread:$0]  %s279, 512, %s282, %s270
        $region44: #{tpu_custom_call.1} parent=39 // pred_fallthru
          _
      $region40: #{tpu_custom_call.1} parent=5 // pred_fallthru
        _
      %p285 = scmp.le.s32.totalorder 1, %s21
      %p286 = scmp.lt.s32.totalorder %s21, 3
      %p287 = pnand %p285, %p286
      %p288 = pneg %p287
      // Predicated region
      $region45: #{tpu_custom_call.1} parent=5 // pred_check
        _
      $region46: #{tpu_custom_call.1} parent=5 // pred_check_branch
        %290 = sbr.rel (%p287) target = $region48
      $region47: #{tpu_custom_call.1} parent=5 // pred_region
        %s291 = ssub.s32 %s21, 1
        %s292 = sand.u32 %s34, 1
        %s293 = scalar_lea.sflag [#allocation5], %s292
        %s294 = sand.u32 %s34, 1
        %s295 = smul.addr %s294, 32
        %s296 = scalar_lea.vmem [#allocation4], %s295
        // Predicated region
        $region49: #{tpu_custom_call.1} parent=47 // pred_check
          %p297 = pneg %p47
        $region50: #{tpu_custom_call.1} parent=47 // pred_check_branch
          %299 = sbr.rel (%p297) target = $region52
        $region51: #{tpu_custom_call.1} parent=47 // pred_region
          %300 = dma.done %s293, 512
        $region52: #{tpu_custom_call.1} parent=47 // pred_fallthru
          _
        // Predicated region
        $region53: #{tpu_custom_call.1} parent=47 // pred_check
          %p301 = pneg %p68
        $region54: #{tpu_custom_call.1} parent=47 // pred_check_branch
          %303 = sbr.rel (%p301) target = $region56
        $region55: #{tpu_custom_call.1} parent=47 // pred_region
          %304 = dma.done [#allocation8], 16384
        $region56: #{tpu_custom_call.1} parent=47 // pred_fallthru
          _
        // Predicated region
        $region57: #{tpu_custom_call.1} parent=47 // pred_check
          %p305 = pneg %p110
        $region58: #{tpu_custom_call.1} parent=47 // pred_check_branch
          %307 = sbr.rel (%p305) target = $region60
        $region59: #{tpu_custom_call.1} parent=47 // pred_region
          %308 = dma.done [#allocation8], 8192
        $region60: #{tpu_custom_call.1} parent=47 // pred_fallthru
          _
        // Predicated region
        $region61: #{tpu_custom_call.1} parent=47 // pred_check
          %p309 = pneg %p152
        $region62: #{tpu_custom_call.1} parent=47 // pred_check_branch
          %311 = sbr.rel (%p309) target = $region64
        $region63: #{tpu_custom_call.1} parent=47 // pred_region
          %312 = dma.done [#allocation11], 4096
        $region64: #{tpu_custom_call.1} parent=47 // pred_fallthru
          _
        %s313 = sand.u32 %s34, 1
        %s314 = scalar_lea.sflag [#allocation5], %s313
        %s315 = sand.u32 %s34, 1
        %s316 = smul.addr %s315, 32
        %s317 = scalar_lea.vmem [#allocation4], %s316
        %p318 = pneg %p47
        %p319 = pneg %p44
        %p320 = pneg %p68
        %p321 = pneg %p65
        %p322 = pneg %p89
        %p323 = pneg %p86
        %p324 = pneg %p110
        %p325 = pneg %p107
        %p326 = pneg %p131
        %p327 = pneg %p128
        %p328 = pneg %p152
        %p329 = pneg %p149
        %p330 = pneg %p173
        %p331 = pneg %p170
        %p332 = pneg %p199
        %p333 = pneg %p196
        %s334 = sand.u32 %s186, 1
        %s335 = scalar_lea.sflag [#allocation6], %s334
        %s336 = sand.u32 %s186, 1
        %s337 = smul.addr %s336, 16
        %s338 = scalar_lea.vmem [#allocation12], %s337
        %v339 = vld [vmem:[%s296] sm:$0xff]
        %v340 = vld [vmem:[%s296 + $0x8] sm:$0xff]
        %v341 = vld [vmem:[%s296 + $0x10] sm:$0xff]
        %v342 = vld [vmem:[%s296 + $0x18] sm:$0xff]
        %v343 = vpack.c.bf16 %v339, %v339
        %v344 = vpack.c.bf16 %v340, %v340
        %v345 = vpack.c.bf16 %v341, %v341
        %v346 = vpack.c.bf16 %v342, %v342
        %v347 = vld [vmem:[#allocation7] sm:$0xff]
        %v348 = vld [vmem:[#allocation7 + $0x8] sm:$0xff]
        %v349 = vld [vmem:[#allocation7 + $0x10] sm:$0xff]
        %v350 = vld [vmem:[#allocation7 + $0x18] sm:$0xff]
        %v351 = vld [vmem:[#allocation7 + $0x20] sm:$0xff]
        %v352 = vld [vmem:[#allocation7 + $0x28] sm:$0xff]
        %v353 = vld [vmem:[#allocation7 + $0x30] sm:$0xff]
        %v354 = vld [vmem:[#allocation7 + $0x38] sm:$0xff]
        %v355 = vld [vmem:[#allocation7 + $0x40] sm:$0xff]
        %v356 = vld [vmem:[#allocation7 + $0x48] sm:$0xff]
        %v357 = vld [vmem:[#allocation7 + $0x50] sm:$0xff]
        %v358 = vld [vmem:[#allocation7 + $0x58] sm:$0xff]
        %v359 = vld [vmem:[#allocation7 + $0x60] sm:$0xff]
        %v360 = vld [vmem:[#allocation7 + $0x68] sm:$0xff]
        %v361 = vld [vmem:[#allocation7 + $0x70] sm:$0xff]
        %v362 = vld [vmem:[#allocation7 + $0x78] sm:$0xff]
        %v363 = vld [vmem:[#allocation7 + $0x80] sm:$0xff]
        %v364 = vld [vmem:[#allocation7 + $0x88] sm:$0xff]
        %v365 = vld [vmem:[#allocation7 + $0x90] sm:$0xff]
        %v366 = vld [vmem:[#allocation7 + $0x98] sm:$0xff]
        %v367 = vld [vmem:[#allocation7 + $0xa0] sm:$0xff]
        %v368 = vld [vmem:[#allocation7 + $0xa8] sm:$0xff]
        %v369 = vld [vmem:[#allocation7 + $0xb0] sm:$0xff]
        %v370 = vld [vmem:[#allocation7 + $0xb8] sm:$0xff]
        %v371 = vld [vmem:[#allocation7 + $0xc0] sm:$0xff]
        %v372 = vld [vmem:[#allocation7 + $0xc8] sm:$0xff]
        %v373 = vld [vmem:[#allocation7 + $0xd0] sm:$0xff]
        %v374 = vld [vmem:[#allocation7 + $0xd8] sm:$0xff]
        %v375 = vld [vmem:[#allocation7 + $0xe0] sm:$0xff]
        %v376 = vld [vmem:[#allocation7 + $0xe8] sm:$0xff]
        %v377 = vld [vmem:[#allocation7 + $0xf0] sm:$0xff]
        %v378 = vld [vmem:[#allocation7 + $0xf8] sm:$0xff]
        %v379 = vld [vmem:[#allocation7 + $0x100] sm:$0xff]
        %v380 = vld [vmem:[#allocation7 + $0x108] sm:$0xff]
        %v381 = vld [vmem:[#allocation7 + $0x110] sm:$0xff]
        %v382 = vld [vmem:[#allocation7 + $0x118] sm:$0xff]
        %v383 = vld [vmem:[#allocation7 + $0x120] sm:$0xff]
        %v384 = vld [vmem:[#allocation7 + $0x128] sm:$0xff]
        %v385 = vld [vmem:[#allocation7 + $0x130] sm:$0xff]
        %v386 = vld [vmem:[#allocation7 + $0x138] sm:$0xff]
        %v387 = vld [vmem:[#allocation7 + $0x140] sm:$0xff]
        %v388 = vld [vmem:[#allocation7 + $0x148] sm:$0xff]
        %v389 = vld [vmem:[#allocation7 + $0x150] sm:$0xff]
        %v390 = vld [vmem:[#allocation7 + $0x158] sm:$0xff]
        %v391 = vld [vmem:[#allocation7 + $0x160] sm:$0xff]
        %v392 = vld [vmem:[#allocation7 + $0x168] sm:$0xff]
        %v393 = vld [vmem:[#allocation7 + $0x170] sm:$0xff]
        %v394 = vld [vmem:[#allocation7 + $0x178] sm:$0xff]
        %v395 = vld [vmem:[#allocation7 + $0x180] sm:$0xff]
        %v396 = vld [vmem:[#allocation7 + $0x188] sm:$0xff]
        %v397 = vld [vmem:[#allocation7 + $0x190] sm:$0xff]
        %v398 = vld [vmem:[#allocation7 + $0x198] sm:$0xff]
        %v399 = vld [vmem:[#allocation7 + $0x1a0] sm:$0xff]
        %v400 = vld [vmem:[#allocation7 + $0x1a8] sm:$0xff]
        %v401 = vld [vmem:[#allocation7 + $0x1b0] sm:$0xff]
        %v402 = vld [vmem:[#allocation7 + $0x1b8] sm:$0xff]
        %v403 = vld [vmem:[#allocation7 + $0x1c0] sm:$0xff]
        %v404 = vld [vmem:[#allocation7 + $0x1c8] sm:$0xff]
        %v405 = vld [vmem:[#allocation7 + $0x1d0] sm:$0xff]
        %v406 = vld [vmem:[#allocation7 + $0x1d8] sm:$0xff]
        %v407 = vld [vmem:[#allocation7 + $0x1e0] sm:$0xff]
        %v408 = vld [vmem:[#allocation7 + $0x1e8] sm:$0xff]
        %v409 = vld [vmem:[#allocation7 + $0x1f0] sm:$0xff]
        %v410 = vld [vmem:[#allocation7 + $0x1f8] sm:$0xff]
        %v411 = vld [vmem:[#allocation7 + $0x200] sm:$0xff]
        %v412 = vld [vmem:[#allocation7 + $0x208] sm:$0xff]
        %v413 = vld [vmem:[#allocation7 + $0x210] sm:$0xff]
        %v414 = vld [vmem:[#allocation7 + $0x218] sm:$0xff]
        %v415 = vld [vmem:[#allocation7 + $0x220] sm:$0xff]
        %v416 = vld [vmem:[#allocation7 + $0x228] sm:$0xff]
        %v417 = vld [vmem:[#allocation7 + $0x230] sm:$0xff]
        %v418 = vld [vmem:[#allocation7 + $0x238] sm:$0xff]
        %v419 = vld [vmem:[#allocation7 + $0x240] sm:$0xff]
        %v420 = vld [vmem:[#allocation7 + $0x248] sm:$0xff]
        %v421 = vld [vmem:[#allocation7 + $0x250] sm:$0xff]
        %v422 = vld [vmem:[#allocation7 + $0x258] sm:$0xff]
        %v423 = vld [vmem:[#allocation7 + $0x260] sm:$0xff]
        %v424 = vld [vmem:[#allocation7 + $0x268] sm:$0xff]
        %v425 = vld [vmem:[#allocation7 + $0x270] sm:$0xff]
        %v426 = vld [vmem:[#allocation7 + $0x278] sm:$0xff]
        %v427 = vld [vmem:[#allocation7 + $0x280] sm:$0xff]
        %v428 = vld [vmem:[#allocation7 + $0x288] sm:$0xff]
        %v429 = vld [vmem:[#allocation7 + $0x290] sm:$0xff]
        %v430 = vld [vmem:[#allocation7 + $0x298] sm:$0xff]
        %v431 = vld [vmem:[#allocation7 + $0x2a0] sm:$0xff]
        %v432 = vld [vmem:[#allocation7 + $0x2a8] sm:$0xff]
        %v433 = vld [vmem:[#allocation7 + $0x2b0] sm:$0xff]
        %v434 = vld [vmem:[#allocation7 + $0x2b8] sm:$0xff]
        %v435 = vld [vmem:[#allocation7 + $0x2c0] sm:$0xff]
        %v436 = vld [vmem:[#allocation7 + $0x2c8] sm:$0xff]
        %v437 = vld [vmem:[#allocation7 + $0x2d0] sm:$0xff]
        %v438 = vld [vmem:[#allocation7 + $0x2d8] sm:$0xff]
        %v439 = vld [vmem:[#allocation7 + $0x2e0] sm:$0xff]
        %v440 = vld [vmem:[#allocation7 + $0x2e8] sm:$0xff]
        %v441 = vld [vmem:[#allocation7 + $0x2f0] sm:$0xff]
        %v442 = vld [vmem:[#allocation7 + $0x2f8] sm:$0xff]
        %v443 = vld [vmem:[#allocation7 + $0x300] sm:$0xff]
        %v444 = vld [vmem:[#allocation7 + $0x308] sm:$0xff]
        %v445 = vld [vmem:[#allocation7 + $0x310] sm:$0xff]
        %v446 = vld [vmem:[#allocation7 + $0x318] sm:$0xff]
        %v447 = vld [vmem:[#allocation7 + $0x320] sm:$0xff]
        %v448 = vld [vmem:[#allocation7 + $0x328] sm:$0xff]
        %v449 = vld [vmem:[#allocation7 + $0x330] sm:$0xff]
        %v450 = vld [vmem:[#allocation7 + $0x338] sm:$0xff]
        %v451 = vld [vmem:[#allocation7 + $0x340] sm:$0xff]
        %v452 = vld [vmem:[#allocation7 + $0x348] sm:$0xff]
        %v453 = vld [vmem:[#allocation7 + $0x350] sm:$0xff]
        %v454 = vld [vmem:[#allocation7 + $0x358] sm:$0xff]
        %v455 = vld [vmem:[#allocation7 + $0x360] sm:$0xff]
        %v456 = vld [vmem:[#allocation7 + $0x368] sm:$0xff]
        %v457 = vld [vmem:[#allocation7 + $0x370] sm:$0xff]
        %v458 = vld [vmem:[#allocation7 + $0x378] sm:$0xff]
        %v459 = vld [vmem:[#allocation7 + $0x380] sm:$0xff]
        %v460 = vld [vmem:[#allocation7 + $0x388] sm:$0xff]
        %v461 = vld [vmem:[#allocation7 + $0x390] sm:$0xff]
        %v462 = vld [vmem:[#allocation7 + $0x398] sm:$0xff]
        %v463 = vld [vmem:[#allocation7 + $0x3a0] sm:$0xff]
        %v464 = vld [vmem:[#allocation7 + $0x3a8] sm:$0xff]
        %v465 = vld [vmem:[#allocation7 + $0x3b0] sm:$0xff]
        %v466 = vld [vmem:[#allocation7 + $0x3b8] sm:$0xff]
        %v467 = vld [vmem:[#allocation7 + $0x3c0] sm:$0xff]
        %v468 = vld [vmem:[#allocation7 + $0x3c8] sm:$0xff]
        %v469 = vld [vmem:[#allocation7 + $0x3d0] sm:$0xff]
        %v470 = vld [vmem:[#allocation7 + $0x3d8] sm:$0xff]
        %v471 = vld [vmem:[#allocation7 + $0x3e0] sm:$0xff]
        %v472 = vld [vmem:[#allocation7 + $0x3e8] sm:$0xff]
        %v473 = vld [vmem:[#allocation7 + $0x3f0] sm:$0xff]
        %v474 = vld [vmem:[#allocation7 + $0x3f8] sm:$0xff]
        %v475 = vld [vmem:[%s2] sm:$0xf]
        %v477 = vlaneseq
        %v478 = vshrl.u32 %v477, 7
        %v479 = vsub.s32 0, %v478
        %v480 = vrot.slane %v475, %v479
        %v481 = vlaneseq
        %v482 = vshrl.u32 %v481, 7
        %v483 = vsub.s32 1, %v482
        %v484 = vrot.slane %v475, %v483
        %v485 = vlaneseq
        %v486 = vshrl.u32 %v485, 7
        %v487 = vsub.s32 2, %v486
        %v488 = vrot.slane %v475, %v487
        %v489 = vlaneseq
        %v490 = vshrl.u32 %v489, 7
        %v491 = vsub.s32 3, %v490
        %v492 = vrot.slane %v475, %v491
        %v625 = vunpack.c.l.b16 %v347
        %v626 = vunpack.c.h.b16 %v347
        %v627 = vunpack.c.l.b16 %v348
        %v628 = vunpack.c.h.b16 %v348
        %v629 = vunpack.c.l.b16 %v349
        %v630 = vunpack.c.h.b16 %v349
        %v631 = vunpack.c.l.b16 %v350
        %v632 = vunpack.c.h.b16 %v350
        %v633 = vunpack.c.l.b16 %v351
        %v634 = vunpack.c.h.b16 %v351
        %v635 = vunpack.c.l.b16 %v352
        %v636 = vunpack.c.h.b16 %v352
        %v637 = vunpack.c.l.b16 %v353
        %v638 = vunpack.c.h.b16 %v353
        %v639 = vunpack.c.l.b16 %v354
        %v640 = vunpack.c.h.b16 %v354
        %v641 = vunpack.c.l.b16 %v355
        %v642 = vunpack.c.h.b16 %v355
        %v643 = vunpack.c.l.b16 %v356
        %v644 = vunpack.c.h.b16 %v356
        %v645 = vunpack.c.l.b16 %v357
        %v646 = vunpack.c.h.b16 %v357
        %v647 = vunpack.c.l.b16 %v358
        %v648 = vunpack.c.h.b16 %v358
        %v649 = vunpack.c.l.b16 %v359
        %v650 = vunpack.c.h.b16 %v359
        %v651 = vunpack.c.l.b16 %v360
        %v652 = vunpack.c.h.b16 %v360
        %v653 = vunpack.c.l.b16 %v361
        %v654 = vunpack.c.h.b16 %v361
        %v655 = vunpack.c.l.b16 %v362
        %v656 = vunpack.c.h.b16 %v362
        %v657 = vunpack.c.l.b16 %v363
        %v658 = vunpack.c.h.b16 %v363
        %v659 = vunpack.c.l.b16 %v364
        %v660 = vunpack.c.h.b16 %v364
        %v661 = vunpack.c.l.b16 %v365
        %v662 = vunpack.c.h.b16 %v365
        %v663 = vunpack.c.l.b16 %v366
        %v664 = vunpack.c.h.b16 %v366
        %v665 = vunpack.c.l.b16 %v367
        %v666 = vunpack.c.h.b16 %v367
        %v667 = vunpack.c.l.b16 %v368
        %v668 = vunpack.c.h.b16 %v368
        %v669 = vunpack.c.l.b16 %v369
        %v670 = vunpack.c.h.b16 %v369
        %v671 = vunpack.c.l.b16 %v370
        %v672 = vunpack.c.h.b16 %v370
        %v673 = vunpack.c.l.b16 %v371
        %v674 = vunpack.c.h.b16 %v371
        %v675 = vunpack.c.l.b16 %v372
        %v676 = vunpack.c.h.b16 %v372
        %v677 = vunpack.c.l.b16 %v373
        %v678 = vunpack.c.h.b16 %v373
        %v679 = vunpack.c.l.b16 %v374
        %v680 = vunpack.c.h.b16 %v374
        %v681 = vunpack.c.l.b16 %v375
        %v682 = vunpack.c.h.b16 %v375
        %v683 = vunpack.c.l.b16 %v376
        %v684 = vunpack.c.h.b16 %v376
        %v685 = vunpack.c.l.b16 %v377
        %v686 = vunpack.c.h.b16 %v377
        %v687 = vunpack.c.l.b16 %v378
        %v688 = vunpack.c.h.b16 %v378
        %v689 = vunpack.c.l.b16 %v379
        %v690 = vunpack.c.h.b16 %v379
        %v691 = vunpack.c.l.b16 %v380
        %v692 = vunpack.c.h.b16 %v380
        %v693 = vunpack.c.l.b16 %v381
        %v694 = vunpack.c.h.b16 %v381
        %v695 = vunpack.c.l.b16 %v382
        %v696 = vunpack.c.h.b16 %v382
        %v697 = vunpack.c.l.b16 %v383
        %v698 = vunpack.c.h.b16 %v383
        %v699 = vunpack.c.l.b16 %v384
        %v700 = vunpack.c.h.b16 %v384
        %v701 = vunpack.c.l.b16 %v385
        %v702 = vunpack.c.h.b16 %v385
        %v703 = vunpack.c.l.b16 %v386
        %v704 = vunpack.c.h.b16 %v386
        %v705 = vunpack.c.l.b16 %v387
        %v706 = vunpack.c.h.b16 %v387
        %v707 = vunpack.c.l.b16 %v388
        %v708 = vunpack.c.h.b16 %v388
        %v709 = vunpack.c.l.b16 %v389
        %v710 = vunpack.c.h.b16 %v389
        %v711 = vunpack.c.l.b16 %v390
        %v712 = vunpack.c.h.b16 %v390
        %v713 = vunpack.c.l.b16 %v391
        %v714 = vunpack.c.h.b16 %v391
        %v715 = vunpack.c.l.b16 %v392
        %v716 = vunpack.c.h.b16 %v392
        %v717 = vunpack.c.l.b16 %v393
        %v718 = vunpack.c.h.b16 %v393
        %v719 = vunpack.c.l.b16 %v394
        %v720 = vunpack.c.h.b16 %v394
        %v721 = vunpack.c.l.b16 %v395
        %v722 = vunpack.c.h.b16 %v395
        %v723 = vunpack.c.l.b16 %v396
        %v724 = vunpack.c.h.b16 %v396
        %v725 = vunpack.c.l.b16 %v397
        %v726 = vunpack.c.h.b16 %v397
        %v727 = vunpack.c.l.b16 %v398
        %v728 = vunpack.c.h.b16 %v398
        %v729 = vunpack.c.l.b16 %v399
        %v730 = vunpack.c.h.b16 %v399
        %v731 = vunpack.c.l.b16 %v400
        %v732 = vunpack.c.h.b16 %v400
        %v733 = vunpack.c.l.b16 %v401
        %v734 = vunpack.c.h.b16 %v401
        %v735 = vunpack.c.l.b16 %v402
        %v736 = vunpack.c.h.b16 %v402
        %v737 = vunpack.c.l.b16 %v403
        %v738 = vunpack.c.h.b16 %v403
        %v739 = vunpack.c.l.b16 %v404
        %v740 = vunpack.c.h.b16 %v404
        %v741 = vunpack.c.l.b16 %v405
        %v742 = vunpack.c.h.b16 %v405
        %v743 = vunpack.c.l.b16 %v406
        %v744 = vunpack.c.h.b16 %v406
        %v745 = vunpack.c.l.b16 %v407
        %v746 = vunpack.c.h.b16 %v407
        %v747 = vunpack.c.l.b16 %v408
        %v748 = vunpack.c.h.b16 %v408
        %v749 = vunpack.c.l.b16 %v409
        %v750 = vunpack.c.h.b16 %v409
        %v751 = vunpack.c.l.b16 %v410
        %v752 = vunpack.c.h.b16 %v410
        %v753 = vunpack.c.l.b16 %v411
        %v754 = vunpack.c.h.b16 %v411
        %v755 = vunpack.c.l.b16 %v412
        %v756 = vunpack.c.h.b16 %v412
        %v757 = vunpack.c.l.b16 %v413
        %v758 = vunpack.c.h.b16 %v413
        %v759 = vunpack.c.l.b16 %v414
        %v760 = vunpack.c.h.b16 %v414
        %v761 = vunpack.c.l.b16 %v415
        %v762 = vunpack.c.h.b16 %v415
        %v763 = vunpack.c.l.b16 %v416
        %v764 = vunpack.c.h.b16 %v416
        %v765 = vunpack.c.l.b16 %v417
        %v766 = vunpack.c.h.b16 %v417
        %v767 = vunpack.c.l.b16 %v418
        %v768 = vunpack.c.h.b16 %v418
        %v769 = vunpack.c.l.b16 %v419
        %v770 = vunpack.c.h.b16 %v419
        %v771 = vunpack.c.l.b16 %v420
        %v772 = vunpack.c.h.b16 %v420
        %v773 = vunpack.c.l.b16 %v421
        %v774 = vunpack.c.h.b16 %v421
        %v775 = vunpack.c.l.b16 %v422
        %v776 = vunpack.c.h.b16 %v422
        %v777 = vunpack.c.l.b16 %v423
        %v778 = vunpack.c.h.b16 %v423
        %v779 = vunpack.c.l.b16 %v424
        %v780 = vunpack.c.h.b16 %v424
        %v781 = vunpack.c.l.b16 %v425
        %v782 = vunpack.c.h.b16 %v425
        %v783 = vunpack.c.l.b16 %v426
        %v784 = vunpack.c.h.b16 %v426
        %v785 = vunpack.c.l.b16 %v427
        %v786 = vunpack.c.h.b16 %v427
        %v787 = vunpack.c.l.b16 %v428
        %v788 = vunpack.c.h.b16 %v428
        %v789 = vunpack.c.l.b16 %v429
        %v790 = vunpack.c.h.b16 %v429
        %v791 = vunpack.c.l.b16 %v430
        %v792 = vunpack.c.h.b16 %v430
        %v793 = vunpack.c.l.b16 %v431
        %v794 = vunpack.c.h.b16 %v431
        %v795 = vunpack.c.l.b16 %v432
        %v796 = vunpack.c.h.b16 %v432
        %v797 = vunpack.c.l.b16 %v433
        %v798 = vunpack.c.h.b16 %v433
        %v799 = vunpack.c.l.b16 %v434
        %v800 = vunpack.c.h.b16 %v434
        %v801 = vunpack.c.l.b16 %v435
        %v802 = vunpack.c.h.b16 %v435
        %v803 = vunpack.c.l.b16 %v436
        %v804 = vunpack.c.h.b16 %v436
        %v805 = vunpack.c.l.b16 %v437
        %v806 = vunpack.c.h.b16 %v437
        %v807 = vunpack.c.l.b16 %v438
        %v808 = vunpack.c.h.b16 %v438
        %v809 = vunpack.c.l.b16 %v439
        %v810 = vunpack.c.h.b16 %v439
        %v811 = vunpack.c.l.b16 %v440
        %v812 = vunpack.c.h.b16 %v440
        %v813 = vunpack.c.l.b16 %v441
        %v814 = vunpack.c.h.b16 %v441
        %v815 = vunpack.c.l.b16 %v442
        %v816 = vunpack.c.h.b16 %v442
        %v817 = vunpack.c.l.b16 %v443
        %v818 = vunpack.c.h.b16 %v443
        %v819 = vunpack.c.l.b16 %v444
        %v820 = vunpack.c.h.b16 %v444
        %v821 = vunpack.c.l.b16 %v445
        %v822 = vunpack.c.h.b16 %v445
        %v823 = vunpack.c.l.b16 %v446
        %v824 = vunpack.c.h.b16 %v446
        %v825 = vunpack.c.l.b16 %v447
        %v826 = vunpack.c.h.b16 %v447
        %v827 = vunpack.c.l.b16 %v448
        %v828 = vunpack.c.h.b16 %v448
        %v829 = vunpack.c.l.b16 %v449
        %v830 = vunpack.c.h.b16 %v449
        %v831 = vunpack.c.l.b16 %v450
        %v832 = vunpack.c.h.b16 %v450
        %v833 = vunpack.c.l.b16 %v451
        %v834 = vunpack.c.h.b16 %v451
        %v835 = vunpack.c.l.b16 %v452
        %v836 = vunpack.c.h.b16 %v452
        %v837 = vunpack.c.l.b16 %v453
        %v838 = vunpack.c.h.b16 %v453
        %v839 = vunpack.c.l.b16 %v454
        %v840 = vunpack.c.h.b16 %v454
        %v841 = vunpack.c.l.b16 %v455
        %v842 = vunpack.c.h.b16 %v455
        %v843 = vunpack.c.l.b16 %v456
        %v844 = vunpack.c.h.b16 %v456
        %v845 = vunpack.c.l.b16 %v457
        %v846 = vunpack.c.h.b16 %v457
        %v847 = vunpack.c.l.b16 %v458
        %v848 = vunpack.c.h.b16 %v458
        %v849 = vunpack.c.l.b16 %v459
        %v850 = vunpack.c.h.b16 %v459
        %v851 = vunpack.c.l.b16 %v460
        %v852 = vunpack.c.h.b16 %v460
        %v853 = vunpack.c.l.b16 %v461
        %v854 = vunpack.c.h.b16 %v461
        %v855 = vunpack.c.l.b16 %v462
        %v856 = vunpack.c.h.b16 %v462
        %v857 = vunpack.c.l.b16 %v463
        %v858 = vunpack.c.h.b16 %v463
        %v859 = vunpack.c.l.b16 %v464
        %v860 = vunpack.c.h.b16 %v464
        %v861 = vunpack.c.l.b16 %v465
        %v862 = vunpack.c.h.b16 %v465
        %v863 = vunpack.c.l.b16 %v466
        %v864 = vunpack.c.h.b16 %v466
        %v865 = vunpack.c.l.b16 %v467
        %v866 = vunpack.c.h.b16 %v467
        %v867 = vunpack.c.l.b16 %v468
        %v868 = vunpack.c.h.b16 %v468
        %v869 = vunpack.c.l.b16 %v469
        %v870 = vunpack.c.h.b16 %v469
        %v871 = vunpack.c.l.b16 %v470
        %v872 = vunpack.c.h.b16 %v470
        %v873 = vunpack.c.l.b16 %v471
        %v874 = vunpack.c.h.b16 %v471
        %v875 = vunpack.c.l.b16 %v472
        %v876 = vunpack.c.h.b16 %v472
        %v877 = vunpack.c.l.b16 %v473
        %v878 = vunpack.c.h.b16 %v473
        %v879 = vunpack.c.l.b16 %v474
        %v880 = vunpack.c.h.b16 %v474
        %v881 = vpack.c.b16 %v629, %v625
        %v882 = vpack.c.b16 %v630, %v626
        %v883 = vpack.c.b16 %v631, %v627
        %v884 = vpack.c.b16 %v632, %v628
        %v885 = vpack.c.b16 %v637, %v633
        %v886 = vpack.c.b16 %v638, %v634
        %v887 = vpack.c.b16 %v639, %v635
        %v888 = vpack.c.b16 %v640, %v636
        %v889 = vpack.c.b16 %v645, %v641
        %v890 = vpack.c.b16 %v646, %v642
        %v891 = vpack.c.b16 %v647, %v643
        %v892 = vpack.c.b16 %v648, %v644
        %v893 = vpack.c.b16 %v653, %v649
        %v894 = vpack.c.b16 %v654, %v650
        %v895 = vpack.c.b16 %v655, %v651
        %v896 = vpack.c.b16 %v656, %v652
        %v897 = vpack.c.b16 %v661, %v657
        %v898 = vpack.c.b16 %v662, %v658
        %v899 = vpack.c.b16 %v663, %v659
        %v900 = vpack.c.b16 %v664, %v660
        %v901 = vpack.c.b16 %v669, %v665
        %v902 = vpack.c.b16 %v670, %v666
        %v903 = vpack.c.b16 %v671, %v667
        %v904 = vpack.c.b16 %v672, %v668
        %v905 = vpack.c.b16 %v677, %v673
        %v906 = vpack.c.b16 %v678, %v674
        %v907 = vpack.c.b16 %v679, %v675
        %v908 = vpack.c.b16 %v680, %v676
        %v909 = vpack.c.b16 %v685, %v681
        %v910 = vpack.c.b16 %v686, %v682
        %v911 = vpack.c.b16 %v687, %v683
        %v912 = vpack.c.b16 %v688, %v684
        %v913 = vpack.c.b16 %v693, %v689
        %v914 = vpack.c.b16 %v694, %v690
        %v915 = vpack.c.b16 %v695, %v691
        %v916 = vpack.c.b16 %v696, %v692
        %v917 = vpack.c.b16 %v701, %v697
        %v918 = vpack.c.b16 %v702, %v698
        %v919 = vpack.c.b16 %v703, %v699
        %v920 = vpack.c.b16 %v704, %v700
        %v921 = vpack.c.b16 %v709, %v705
        %v922 = vpack.c.b16 %v710, %v706
        %v923 = vpack.c.b16 %v711, %v707
        %v924 = vpack.c.b16 %v712, %v708
        %v925 = vpack.c.b16 %v717, %v713
        %v926 = vpack.c.b16 %v718, %v714
        %v927 = vpack.c.b16 %v719, %v715
        %v928 = vpack.c.b16 %v720, %v716
        %v929 = vpack.c.b16 %v725, %v721
        %v930 = vpack.c.b16 %v726, %v722
        %v931 = vpack.c.b16 %v727, %v723
        %v932 = vpack.c.b16 %v728, %v724
        %v933 = vpack.c.b16 %v733, %v729
        %v934 = vpack.c.b16 %v734, %v730
        %v935 = vpack.c.b16 %v735, %v731
        %v936 = vpack.c.b16 %v736, %v732
        %v937 = vpack.c.b16 %v741, %v737
        %v938 = vpack.c.b16 %v742, %v738
        %v939 = vpack.c.b16 %v743, %v739
        %v940 = vpack.c.b16 %v744, %v740
        %v941 = vpack.c.b16 %v749, %v745
        %v942 = vpack.c.b16 %v750, %v746
        %v943 = vpack.c.b16 %v751, %v747
        %v944 = vpack.c.b16 %v752, %v748
        %v945 = vpack.c.b16 %v757, %v753
        %v946 = vpack.c.b16 %v758, %v754
        %v947 = vpack.c.b16 %v759, %v755
        %v948 = vpack.c.b16 %v760, %v756
        %v949 = vpack.c.b16 %v765, %v761
        %v950 = vpack.c.b16 %v766, %v762
        %v951 = vpack.c.b16 %v767, %v763
        %v952 = vpack.c.b16 %v768, %v764
        %v953 = vpack.c.b16 %v773, %v769
        %v954 = vpack.c.b16 %v774, %v770
        %v955 = vpack.c.b16 %v775, %v771
        %v956 = vpack.c.b16 %v776, %v772
        %v957 = vpack.c.b16 %v781, %v777
        %v958 = vpack.c.b16 %v782, %v778
        %v959 = vpack.c.b16 %v783, %v779
        %v960 = vpack.c.b16 %v784, %v780
        %v961 = vpack.c.b16 %v789, %v785
        %v962 = vpack.c.b16 %v790, %v786
        %v963 = vpack.c.b16 %v791, %v787
        %v964 = vpack.c.b16 %v792, %v788
        %v965 = vpack.c.b16 %v797, %v793
        %v966 = vpack.c.b16 %v798, %v794
        %v967 = vpack.c.b16 %v799, %v795
        %v968 = vpack.c.b16 %v800, %v796
        %v969 = vpack.c.b16 %v805, %v801
        %v970 = vpack.c.b16 %v806, %v802
        %v971 = vpack.c.b16 %v807, %v803
        %v972 = vpack.c.b16 %v808, %v804
        %v973 = vpack.c.b16 %v813, %v809
        %v974 = vpack.c.b16 %v814, %v810
        %v975 = vpack.c.b16 %v815, %v811
        %v976 = vpack.c.b16 %v816, %v812
        %v977 = vpack.c.b16 %v821, %v817
        %v978 = vpack.c.b16 %v822, %v818
        %v979 = vpack.c.b16 %v823, %v819
        %v980 = vpack.c.b16 %v824, %v820
        %v981 = vpack.c.b16 %v829, %v825
        %v982 = vpack.c.b16 %v830, %v826
        %v983 = vpack.c.b16 %v831, %v827
        %v984 = vpack.c.b16 %v832, %v828
        %v985 = vpack.c.b16 %v837, %v833
        %v986 = vpack.c.b16 %v838, %v834
        %v987 = vpack.c.b16 %v839, %v835
        %v988 = vpack.c.b16 %v840, %v836
        %v989 = vpack.c.b16 %v845, %v841
        %v990 = vpack.c.b16 %v846, %v842
        %v991 = vpack.c.b16 %v847, %v843
        %v992 = vpack.c.b16 %v848, %v844
        %v993 = vpack.c.b16 %v853, %v849
        %v994 = vpack.c.b16 %v854, %v850
        %v995 = vpack.c.b16 %v855, %v851
        %v996 = vpack.c.b16 %v856, %v852
        %v997 = vpack.c.b16 %v861, %v857
        %v998 = vpack.c.b16 %v862, %v858
        %v999 = vpack.c.b16 %v863, %v859
        %v1000 = vpack.c.b16 %v864, %v860
        %v1001 = vpack.c.b16 %v869, %v865
        %v1002 = vpack.c.b16 %v870, %v866
        %v1003 = vpack.c.b16 %v871, %v867
        %v1004 = vpack.c.b16 %v872, %v868
        %v1005 = vpack.c.b16 %v877, %v873
        %v1006 = vpack.c.b16 %v878, %v874
        %v1007 = vpack.c.b16 %v879, %v875
        %v1008 = vpack.c.b16 %v880, %v876
        %1137 = vmatprep.subr.bf16.mxu0 %v882
        %1138 = vmatpush1.bf16.msra.mxu0 %v881
        %1139 = vmatprep.subr.bf16.mxu0 %v886
        %1140 = vmatpush1.bf16.msra.mxu0 %v885
        %1141 = vmatprep.subr.bf16.mxu0 %v890
        %1142 = vmatpush1.bf16.msra.mxu0 %v889
        %1143 = vmatprep.subr.bf16.mxu0 %v894
        %1144 = vmatpush1.bf16.msra.mxu0 %v893
        %1145 = vmatprep.subr.bf16.mxu0 %v898
        %1146 = vmatpush1.bf16.msra.mxu0 %v897
        %1147 = vmatprep.subr.bf16.mxu0 %v902
        %1148 = vmatpush1.bf16.msra.mxu0 %v901
        %1149 = vmatprep.subr.bf16.mxu0 %v906
        %1150 = vmatpush1.bf16.msra.mxu0 %v905
        %1151 = vmatprep.subr.bf16.mxu0 %v910
        %1152 = vmatpush1.bf16.msra.mxu0 %v909
        %1153 = vmatprep.subr.bf16.mxu0 %v914
        %1154 = vmatpush1.bf16.msra.mxu0 %v913
        %1155 = vmatprep.subr.bf16.mxu0 %v918
        %1156 = vmatpush1.bf16.msra.mxu0 %v917
        %1157 = vmatprep.subr.bf16.mxu0 %v922
        %1158 = vmatpush1.bf16.msra.mxu0 %v921
        %1159 = vmatprep.subr.bf16.mxu0 %v926
        %1160 = vmatpush1.bf16.msra.mxu0 %v925
        %1161 = vmatprep.subr.bf16.mxu0 %v930
        %1162 = vmatpush1.bf16.msra.mxu0 %v929
        %1163 = vmatprep.subr.bf16.mxu0 %v934
        %1164 = vmatpush1.bf16.msra.mxu0 %v933
        %1165 = vmatprep.subr.bf16.mxu0 %v938
        %1166 = vmatpush1.bf16.msra.mxu0 %v937
        %1167 = vmatprep.subr.bf16.mxu0 %v942
        %1168 = vmatpush1.bf16.msra.mxu0 %v941
        %1169 = vmatprep.mubr.bf16.mxu0 %v344
        %1170 = vmatmul.mubr.bf16.gmra.mrb[0].mxu0 %v343
        %v1171 = vpop.f32.mrb[0].mxu0
        %v1172 = vadd.f32 %v480, %v1171
        %v1173 = vpop.f32.mrb[0].mxu0
        %v1174 = vadd.f32 %v484, %v1173
        %v1175 = vpop.f32.mrb[0].mxu0
        %v1176 = vpop.f32.mrb[0].mxu0
        %1177 = vdwg.mxu0
        %1178 = vmatprep.subr.bf16.mxu0 %v946
        %1179 = vmatpush1.bf16.msra.mxu0 %v945
        %1180 = vmatprep.subr.bf16.mxu0 %v950
        %1181 = vmatpush1.bf16.msra.mxu0 %v949
        %1182 = vmatprep.subr.bf16.mxu0 %v954
        %1183 = vmatpush1.bf16.msra.mxu0 %v953
        %1184 = vmatprep.subr.bf16.mxu0 %v958
        %1185 = vmatpush1.bf16.msra.mxu0 %v957
        %1186 = vmatprep.subr.bf16.mxu0 %v962
        %1187 = vmatpush1.bf16.msra.mxu0 %v961
        %1188 = vmatprep.subr.bf16.mxu0 %v966
        %1189 = vmatpush1.bf16.msra.mxu0 %v965
        %1190 = vmatprep.subr.bf16.mxu0 %v970
        %1191 = vmatpush1.bf16.msra.mxu0 %v969
        %1192 = vmatprep.subr.bf16.mxu0 %v974
        %1193 = vmatpush1.bf16.msra.mxu0 %v973
        %1194 = vmatprep.subr.bf16.mxu0 %v978
        %1195 = vmatpush1.bf16.msra.mxu0 %v977
        %1196 = vmatprep.subr.bf16.mxu0 %v982
        %1197 = vmatpush1.bf16.msra.mxu0 %v981
        %1198 = vmatprep.subr.bf16.mxu0 %v986
        %1199 = vmatpush1.bf16.msra.mxu0 %v985
        %1200 = vmatprep.subr.bf16.mxu0 %v990
        %1201 = vmatpush1.bf16.msra.mxu0 %v989
        %1202 = vmatprep.subr.bf16.mxu0 %v994
        %1203 = vmatpush1.bf16.msra.mxu0 %v993
        %1204 = vmatprep.subr.bf16.mxu0 %v998
        %1205 = vmatpush1.bf16.msra.mxu0 %v997
        %1206 = vmatprep.subr.bf16.mxu0 %v1002
        %1207 = vmatpush1.bf16.msra.mxu0 %v1001
        %1208 = vmatprep.subr.bf16.mxu0 %v1006
        %1209 = vmatpush1.bf16.msra.mxu0 %v1005
        %1210 = vmatprep.mubr.bf16.mxu0 %v346
        %1211 = vmatmul.mubr.bf16.gmra.mrb[0].mxu0 %v345
        %v1212 = vpop.f32.mrb[0].mxu0
        %v1213 = vadd.f32 %v1172, %v1212
        %v1214 = vpop.f32.mrb[0].mxu0
        %v1215 = vadd.f32 %v1174, %v1214
        %v1216 = vpop.f32.mrb[0].mxu0
        %v1217 = vpop.f32.mrb[0].mxu0
        %1218 = vdwg.mxu0
        %1219 = vmatprep.subr.bf16.mxu0 %v884
        %1220 = vmatpush1.bf16.msra.mxu0 %v883
        %1221 = vmatprep.subr.bf16.mxu0 %v888
        %1222 = vmatpush1.bf16.msra.mxu0 %v887
        %1223 = vmatprep.subr.bf16.mxu0 %v892
        %1224 = vmatpush1.bf16.msra.mxu0 %v891
        %1225 = vmatprep.subr.bf16.mxu0 %v896
        %1226 = vmatpush1.bf16.msra.mxu0 %v895
        %1227 = vmatprep.subr.bf16.mxu0 %v900
        %1228 = vmatpush1.bf16.msra.mxu0 %v899
        %1229 = vmatprep.subr.bf16.mxu0 %v904
        %1230 = vmatpush1.bf16.msra.mxu0 %v903
        %1231 = vmatprep.subr.bf16.mxu0 %v908
        %1232 = vmatpush1.bf16.msra.mxu0 %v907
        %1233 = vmatprep.subr.bf16.mxu0 %v912
        %1234 = vmatpush1.bf16.msra.mxu0 %v911
        %1235 = vmatprep.subr.bf16.mxu0 %v916
        %1236 = vmatpush1.bf16.msra.mxu0 %v915
        %1237 = vmatprep.subr.bf16.mxu0 %v920
        %1238 = vmatpush1.bf16.msra.mxu0 %v919
        %1239 = vmatprep.subr.bf16.mxu0 %v924
        %1240 = vmatpush1.bf16.msra.mxu0 %v923
        %1241 = vmatprep.subr.bf16.mxu0 %v928
        %1242 = vmatpush1.bf16.msra.mxu0 %v927
        %1243 = vmatprep.subr.bf16.mxu0 %v932
        %1244 = vmatpush1.bf16.msra.mxu0 %v931
        %1245 = vmatprep.subr.bf16.mxu0 %v936
        %1246 = vmatpush1.bf16.msra.mxu0 %v935
        %1247 = vmatprep.subr.bf16.mxu0 %v940
        %1248 = vmatpush1.bf16.msra.mxu0 %v939
        %1249 = vmatprep.subr.bf16.mxu0 %v944
        %1250 = vmatpush1.bf16.msra.mxu0 %v943
        %1251 = vmatprep.mubr.bf16.mxu0 %v344
        %1252 = vmatmul.mubr.bf16.gmra.mrb[0].mxu0 %v343
        %v1253 = vpop.f32.mrb[0].mxu0
        %v1254 = vadd.f32 %v488, %v1253
        %v1255 = vpop.f32.mrb[0].mxu0
        %v1256 = vadd.f32 %v492, %v1255
        %v1257 = vpop.f32.mrb[0].mxu0
        %v1258 = vpop.f32.mrb[0].mxu0
        %1259 = vdwg.mxu0
        %1260 = vmatprep.subr.bf16.mxu0 %v948
        %1261 = vmatpush1.bf16.msra.mxu0 %v947
        %1262 = vmatprep.subr.bf16.mxu0 %v952
        %1263 = vmatpush1.bf16.msra.mxu0 %v951
        %1264 = vmatprep.subr.bf16.mxu0 %v956
        %1265 = vmatpush1.bf16.msra.mxu0 %v955
        %1266 = vmatprep.subr.bf16.mxu0 %v960
        %1267 = vmatpush1.bf16.msra.mxu0 %v959
        %1268 = vmatprep.subr.bf16.mxu0 %v964
        %1269 = vmatpush1.bf16.msra.mxu0 %v963
        %1270 = vmatprep.subr.bf16.mxu0 %v968
        %1271 = vmatpush1.bf16.msra.mxu0 %v967
        %1272 = vmatprep.subr.bf16.mxu0 %v972
        %1273 = vmatpush1.bf16.msra.mxu0 %v971
        %1274 = vmatprep.subr.bf16.mxu0 %v976
        %1275 = vmatpush1.bf16.msra.mxu0 %v975
        %1276 = vmatprep.subr.bf16.mxu0 %v980
        %1277 = vmatpush1.bf16.msra.mxu0 %v979
        %1278 = vmatprep.subr.bf16.mxu0 %v984
        %1279 = vmatpush1.bf16.msra.mxu0 %v983
        %1280 = vmatprep.subr.bf16.mxu0 %v988
        %1281 = vmatpush1.bf16.msra.mxu0 %v987
        %1282 = vmatprep.subr.bf16.mxu0 %v992
        %1283 = vmatpush1.bf16.msra.mxu0 %v991
        %1284 = vmatprep.subr.bf16.mxu0 %v996
        %1285 = vmatpush1.bf16.msra.mxu0 %v995
        %1286 = vmatprep.subr.bf16.mxu0 %v1000
        %1287 = vmatpush1.bf16.msra.mxu0 %v999
        %1288 = vmatprep.subr.bf16.mxu0 %v1004
        %1289 = vmatpush1.bf16.msra.mxu0 %v1003
        %1290 = vmatprep.subr.bf16.mxu0 %v1008
        %1291 = vmatpush1.bf16.msra.mxu0 %v1007
        %1292 = vmatprep.mubr.bf16.mxu0 %v346
        %1293 = vmatmul.mubr.bf16.gmra.mrb[0].mxu0 %v345
        %v1294 = vpop.f32.mrb[0].mxu0
        %v1295 = vadd.f32 %v1254, %v1294
        %v1296 = vpop.f32.mrb[0].mxu0
        %v1297 = vadd.f32 %v1256, %v1296
        %v1298 = vpop.f32.mrb[0].mxu0
        %v1299 = vpop.f32.mrb[0].mxu0
        %1300 = vdwg.mxu0
        %v1301 = vmax.f32 %v1213, 0.0
        %v1302 = vmax.f32 %v1215, 0.0
        %v1303 = vmax.f32 %v1295, 0.0
        %v1304 = vmax.f32 %v1297, 0.0
        %v1305 = vpack.c.bf16 %v1301, %v1301
        %v1306 = vpack.c.bf16 %v1302, %v1302
        %v1307 = vpack.c.bf16 %v1303, %v1303
        %v1308 = vpack.c.bf16 %v1304, %v1304
        %v1313 = vunpack.c.l.b16 %v1305
        %v1314 = vunpack.c.l.b16 %v1306
        %v1315 = vunpack.c.l.b16 %v1307
        %v1316 = vunpack.c.l.b16 %v1308
        %v1317 = vpack.c.b16 %v1314, %v1313
        %v1318 = vpack.c.b16 %v1316, %v1315
        %1321 = vst [vmem:[#allocation2] sm:$0xff] %v1317
        %1322 = vst [vmem:[#allocation2 + $0x8] sm:$0xff] %v1318
        %v1323 = vld [vmem:[#allocation2] sm:$0xff]
        %v1324 = vld [vmem:[#allocation2 + $0x8] sm:$0xff]
        %v1325 = vld [vmem:[#allocation9] sm:$0xff]
        %v1326 = vld [vmem:[#allocation9 + $0x8] sm:$0xff]
        %v1327 = vld [vmem:[#allocation9 + $0x10] sm:$0xff]
        %v1328 = vld [vmem:[#allocation9 + $0x18] sm:$0xff]
        %v1329 = vld [vmem:[#allocation9 + $0x20] sm:$0xff]
        %v1330 = vld [vmem:[#allocation9 + $0x28] sm:$0xff]
        %v1331 = vld [vmem:[#allocation9 + $0x30] sm:$0xff]
        %v1332 = vld [vmem:[#allocation9 + $0x38] sm:$0xff]
        %v1333 = vld [vmem:[#allocation9 + $0x40] sm:$0xff]
        %v1334 = vld [vmem:[#allocation9 + $0x48] sm:$0xff]
        %v1335 = vld [vmem:[#allocation9 + $0x50] sm:$0xff]
        %v1336 = vld [vmem:[#allocation9 + $0x58] sm:$0xff]
        %v1337 = vld [vmem:[#allocation9 + $0x60] sm:$0xff]
        %v1338 = vld [vmem:[#allocation9 + $0x68] sm:$0xff]
        %v1339 = vld [vmem:[#allocation9 + $0x70] sm:$0xff]
        %v1340 = vld [vmem:[#allocation9 + $0x78] sm:$0xff]
        %v1341 = vld [vmem:[#allocation9 + $0x80] sm:$0xff]
        %v1342 = vld [vmem:[#allocation9 + $0x88] sm:$0xff]
        %v1343 = vld [vmem:[#allocation9 + $0x90] sm:$0xff]
        %v1344 = vld [vmem:[#allocation9 + $0x98] sm:$0xff]
        %v1345 = vld [vmem:[#allocation9 + $0xa0] sm:$0xff]
        %v1346 = vld [vmem:[#allocation9 + $0xa8] sm:$0xff]
        %v1347 = vld [vmem:[#allocation9 + $0xb0] sm:$0xff]
        %v1348 = vld [vmem:[#allocation9 + $0xb8] sm:$0xff]
        %v1349 = vld [vmem:[#allocation9 + $0xc0] sm:$0xff]
        %v1350 = vld [vmem:[#allocation9 + $0xc8] sm:$0xff]
        %v1351 = vld [vmem:[#allocation9 + $0xd0] sm:$0xff]
        %v1352 = vld [vmem:[#allocation9 + $0xd8] sm:$0xff]
        %v1353 = vld [vmem:[#allocation9 + $0xe0] sm:$0xff]
        %v1354 = vld [vmem:[#allocation9 + $0xe8] sm:$0xff]
        %v1355 = vld [vmem:[#allocation9 + $0xf0] sm:$0xff]
        %v1356 = vld [vmem:[#allocation9 + $0xf8] sm:$0xff]
        %v1357 = vld [vmem:[#allocation9 + $0x100] sm:$0xff]
        %v1358 = vld [vmem:[#allocation9 + $0x108] sm:$0xff]
        %v1359 = vld [vmem:[#allocation9 + $0x110] sm:$0xff]
        %v1360 = vld [vmem:[#allocation9 + $0x118] sm:$0xff]
        %v1361 = vld [vmem:[#allocation9 + $0x120] sm:$0xff]
        %v1362 = vld [vmem:[#allocation9 + $0x128] sm:$0xff]
        %v1363 = vld [vmem:[#allocation9 + $0x130] sm:$0xff]
        %v1364 = vld [vmem:[#allocation9 + $0x138] sm:$0xff]
        %v1365 = vld [vmem:[#allocation9 + $0x140] sm:$0xff]
        %v1366 = vld [vmem:[#allocation9 + $0x148] sm:$0xff]
        %v1367 = vld [vmem:[#allocation9 + $0x150] sm:$0xff]
        %v1368 = vld [vmem:[#allocation9 + $0x158] sm:$0xff]
        %v1369 = vld [vmem:[#allocation9 + $0x160] sm:$0xff]
        %v1370 = vld [vmem:[#allocation9 + $0x168] sm:$0xff]
        %v1371 = vld [vmem:[#allocation9 + $0x170] sm:$0xff]
        %v1372 = vld [vmem:[#allocation9 + $0x178] sm:$0xff]
        %v1373 = vld [vmem:[#allocation9 + $0x180] sm:$0xff]
        %v1374 = vld [vmem:[#allocation9 + $0x188] sm:$0xff]
        %v1375 = vld [vmem:[#allocation9 + $0x190] sm:$0xff]
        %v1376 = vld [vmem:[#allocation9 + $0x198] sm:$0xff]
        %v1377 = vld [vmem:[#allocation9 + $0x1a0] sm:$0xff]
        %v1378 = vld [vmem:[#allocation9 + $0x1a8] sm:$0xff]
        %v1379 = vld [vmem:[#allocation9 + $0x1b0] sm:$0xff]
        %v1380 = vld [vmem:[#allocation9 + $0x1b8] sm:$0xff]
        %v1381 = vld [vmem:[#allocation9 + $0x1c0] sm:$0xff]
        %v1382 = vld [vmem:[#allocation9 + $0x1c8] sm:$0xff]
        %v1383 = vld [vmem:[#allocation9 + $0x1d0] sm:$0xff]
        %v1384 = vld [vmem:[#allocation9 + $0x1d8] sm:$0xff]
        %v1385 = vld [vmem:[#allocation9 + $0x1e0] sm:$0xff]
        %v1386 = vld [vmem:[#allocation9 + $0x1e8] sm:$0xff]
        %v1387 = vld [vmem:[#allocation9 + $0x1f0] sm:$0xff]
        %v1388 = vld [vmem:[#allocation9 + $0x1f8] sm:$0xff]
        %v1389 = vld [vmem:[%s4] sm:$0x3]
        %v1391 = vlaneseq
        %v1392 = vshrl.u32 %v1391, 7
        %v1393 = vsub.s32 0, %v1392
        %v1394 = vrot.slane %v1389, %v1393
        %v1395 = vlaneseq
        %v1396 = vshrl.u32 %v1395, 7
        %v1397 = vsub.s32 1, %v1396
        %v1398 = vrot.slane %v1389, %v1397
        %v1403 = vunpack.c.l.b16 %v1323
        %v1404 = vunpack.c.h.b16 %v1323
        %v1405 = vunpack.c.l.b16 %v1324
        %v1406 = vunpack.c.h.b16 %v1324
        %v1407 = vpack.c.b16 %v1403, %v1403
        %v1408 = vpack.c.b16 %v1404, %v1404
        %v1409 = vpack.c.b16 %v1405, %v1405
        %v1410 = vpack.c.b16 %v1406, %v1406
        %v1479 = vunpack.c.l.b16 %v1325
        %v1480 = vunpack.c.h.b16 %v1325
        %v1481 = vunpack.c.l.b16 %v1326
        %v1482 = vunpack.c.h.b16 %v1326
        %v1483 = vunpack.c.l.b16 %v1327
        %v1484 = vunpack.c.h.b16 %v1327
        %v1485 = vunpack.c.l.b16 %v1328
        %v1486 = vunpack.c.h.b16 %v1328
        %v1487 = vunpack.c.l.b16 %v1329
        %v1488 = vunpack.c.h.b16 %v1329
        %v1489 = vunpack.c.l.b16 %v1330
        %v1490 = vunpack.c.h.b16 %v1330
        %v1491 = vunpack.c.l.b16 %v1331
        %v1492 = vunpack.c.h.b16 %v1331
        %v1493 = vunpack.c.l.b16 %v1332
        %v1494 = vunpack.c.h.b16 %v1332
        %v1495 = vunpack.c.l.b16 %v1333
        %v1496 = vunpack.c.h.b16 %v1333
        %v1497 = vunpack.c.l.b16 %v1334
        %v1498 = vunpack.c.h.b16 %v1334
        %v1499 = vunpack.c.l.b16 %v1335
        %v1500 = vunpack.c.h.b16 %v1335
        %v1501 = vunpack.c.l.b16 %v1336
        %v1502 = vunpack.c.h.b16 %v1336
        %v1503 = vunpack.c.l.b16 %v1337
        %v1504 = vunpack.c.h.b16 %v1337
        %v1505 = vunpack.c.l.b16 %v1338
        %v1506 = vunpack.c.h.b16 %v1338
        %v1507 = vunpack.c.l.b16 %v1339
        %v1508 = vunpack.c.h.b16 %v1339
        %v1509 = vunpack.c.l.b16 %v1340
        %v1510 = vunpack.c.h.b16 %v1340
        %v1511 = vunpack.c.l.b16 %v1341
        %v1512 = vunpack.c.h.b16 %v1341
        %v1513 = vunpack.c.l.b16 %v1342
        %v1514 = vunpack.c.h.b16 %v1342
        %v1515 = vunpack.c.l.b16 %v1343
        %v1516 = vunpack.c.h.b16 %v1343
        %v1517 = vunpack.c.l.b16 %v1344
        %v1518 = vunpack.c.h.b16 %v1344
        %v1519 = vunpack.c.l.b16 %v1345
        %v1520 = vunpack.c.h.b16 %v1345
        %v1521 = vunpack.c.l.b16 %v1346
        %v1522 = vunpack.c.h.b16 %v1346
        %v1523 = vunpack.c.l.b16 %v1347
        %v1524 = vunpack.c.h.b16 %v1347
        %v1525 = vunpack.c.l.b16 %v1348
        %v1526 = vunpack.c.h.b16 %v1348
        %v1527 = vunpack.c.l.b16 %v1349
        %v1528 = vunpack.c.h.b16 %v1349
        %v1529 = vunpack.c.l.b16 %v1350
        %v1530 = vunpack.c.h.b16 %v1350
        %v1531 = vunpack.c.l.b16 %v1351
        %v1532 = vunpack.c.h.b16 %v1351
        %v1533 = vunpack.c.l.b16 %v1352
        %v1534 = vunpack.c.h.b16 %v1352
        %v1535 = vunpack.c.l.b16 %v1353
        %v1536 = vunpack.c.h.b16 %v1353
        %v1537 = vunpack.c.l.b16 %v1354
        %v1538 = vunpack.c.h.b16 %v1354
        %v1539 = vunpack.c.l.b16 %v1355
        %v1540 = vunpack.c.h.b16 %v1355
        %v1541 = vunpack.c.l.b16 %v1356
        %v1542 = vunpack.c.h.b16 %v1356
        %v1543 = vunpack.c.l.b16 %v1357
        %v1544 = vunpack.c.h.b16 %v1357
        %v1545 = vunpack.c.l.b16 %v1358
        %v1546 = vunpack.c.h.b16 %v1358
        %v1547 = vunpack.c.l.b16 %v1359
        %v1548 = vunpack.c.h.b16 %v1359
        %v1549 = vunpack.c.l.b16 %v1360
        %v1550 = vunpack.c.h.b16 %v1360
        %v1551 = vunpack.c.l.b16 %v1361
        %v1552 = vunpack.c.h.b16 %v1361
        %v1553 = vunpack.c.l.b16 %v1362
        %v1554 = vunpack.c.h.b16 %v1362
        %v1555 = vunpack.c.l.b16 %v1363
        %v1556 = vunpack.c.h.b16 %v1363
        %v1557 = vunpack.c.l.b16 %v1364
        %v1558 = vunpack.c.h.b16 %v1364
        %v1559 = vunpack.c.l.b16 %v1365
        %v1560 = vunpack.c.h.b16 %v1365
        %v1561 = vunpack.c.l.b16 %v1366
        %v1562 = vunpack.c.h.b16 %v1366
        %v1563 = vunpack.c.l.b16 %v1367
        %v1564 = vunpack.c.h.b16 %v1367
        %v1565 = vunpack.c.l.b16 %v1368
        %v1566 = vunpack.c.h.b16 %v1368
        %v1567 = vunpack.c.l.b16 %v1369
        %v1568 = vunpack.c.h.b16 %v1369
        %v1569 = vunpack.c.l.b16 %v1370
        %v1570 = vunpack.c.h.b16 %v1370
        %v1571 = vunpack.c.l.b16 %v1371
        %v1572 = vunpack.c.h.b16 %v1371
        %v1573 = vunpack.c.l.b16 %v1372
        %v1574 = vunpack.c.h.b16 %v1372
        %v1575 = vunpack.c.l.b16 %v1373
        %v1576 = vunpack.c.h.b16 %v1373
        %v1577 = vunpack.c.l.b16 %v1374
        %v1578 = vunpack.c.h.b16 %v1374
        %v1579 = vunpack.c.l.b16 %v1375
        %v1580 = vunpack.c.h.b16 %v1375
        %v1581 = vunpack.c.l.b16 %v1376
        %v1582 = vunpack.c.h.b16 %v1376
        %v1583 = vunpack.c.l.b16 %v1377
        %v1584 = vunpack.c.h.b16 %v1377
        %v1585 = vunpack.c.l.b16 %v1378
        %v1586 = vunpack.c.h.b16 %v1378
        %v1587 = vunpack.c.l.b16 %v1379
        %v1588 = vunpack.c.h.b16 %v1379
        %v1589 = vunpack.c.l.b16 %v1380
        %v1590 = vunpack.c.h.b16 %v1380
        %v1591 = vunpack.c.l.b16 %v1381
        %v1592 = vunpack.c.h.b16 %v1381
        %v1593 = vunpack.c.l.b16 %v1382
        %v1594 = vunpack.c.h.b16 %v1382
        %v1595 = vunpack.c.l.b16 %v1383
        %v1596 = vunpack.c.h.b16 %v1383
        %v1597 = vunpack.c.l.b16 %v1384
        %v1598 = vunpack.c.h.b16 %v1384
        %v1599 = vunpack.c.l.b16 %v1385
        %v1600 = vunpack.c.h.b16 %v1385
        %v1601 = vunpack.c.l.b16 %v1386
        %v1602 = vunpack.c.h.b16 %v1386
        %v1603 = vunpack.c.l.b16 %v1387
        %v1604 = vunpack.c.h.b16 %v1387
        %v1605 = vunpack.c.l.b16 %v1388
        %v1606 = vunpack.c.h.b16 %v1388
        %v1607 = vpack.c.b16 %v1481, %v1479
        %v1608 = vpack.c.b16 %v1482, %v1480
        %v1609 = vpack.c.b16 %v1485, %v1483
        %v1610 = vpack.c.b16 %v1486, %v1484
        %v1611 = vpack.c.b16 %v1489, %v1487
        %v1612 = vpack.c.b16 %v1490, %v1488
        %v1613 = vpack.c.b16 %v1493, %v1491
        %v1614 = vpack.c.b16 %v1494, %v1492
        %v1615 = vpack.c.b16 %v1497, %v1495
        %v1616 = vpack.c.b16 %v1498, %v1496
        %v1617 = vpack.c.b16 %v1501, %v1499
        %v1618 = vpack.c.b16 %v1502, %v1500
        %v1619 = vpack.c.b16 %v1505, %v1503
        %v1620 = vpack.c.b16 %v1506, %v1504
        %v1621 = vpack.c.b16 %v1509, %v1507
        %v1622 = vpack.c.b16 %v1510, %v1508
        %v1623 = vpack.c.b16 %v1513, %v1511
        %v1624 = vpack.c.b16 %v1514, %v1512
        %v1625 = vpack.c.b16 %v1517, %v1515
        %v1626 = vpack.c.b16 %v1518, %v1516
        %v1627 = vpack.c.b16 %v1521, %v1519
        %v1628 = vpack.c.b16 %v1522, %v1520
        %v1629 = vpack.c.b16 %v1525, %v1523
        %v1630 = vpack.c.b16 %v1526, %v1524
        %v1631 = vpack.c.b16 %v1529, %v1527
        %v1632 = vpack.c.b16 %v1530, %v1528
        %v1633 = vpack.c.b16 %v1533, %v1531
        %v1634 = vpack.c.b16 %v1534, %v1532
        %v1635 = vpack.c.b16 %v1537, %v1535
        %v1636 = vpack.c.b16 %v1538, %v1536
        %v1637 = vpack.c.b16 %v1541, %v1539
        %v1638 = vpack.c.b16 %v1542, %v1540
        %v1639 = vpack.c.b16 %v1545, %v1543
        %v1640 = vpack.c.b16 %v1546, %v1544
        %v1641 = vpack.c.b16 %v1549, %v1547
        %v1642 = vpack.c.b16 %v1550, %v1548
        %v1643 = vpack.c.b16 %v1553, %v1551
        %v1644 = vpack.c.b16 %v1554, %v1552
        %v1645 = vpack.c.b16 %v1557, %v1555
        %v1646 = vpack.c.b16 %v1558, %v1556
        %v1647 = vpack.c.b16 %v1561, %v1559
        %v1648 = vpack.c.b16 %v1562, %v1560
        %v1649 = vpack.c.b16 %v1565, %v1563
        %v1650 = vpack.c.b16 %v1566, %v1564
        %v1651 = vpack.c.b16 %v1569, %v1567
        %v1652 = vpack.c.b16 %v1570, %v1568
        %v1653 = vpack.c.b16 %v1573, %v1571
        %v1654 = vpack.c.b16 %v1574, %v1572
        %v1655 = vpack.c.b16 %v1577, %v1575
        %v1656 = vpack.c.b16 %v1578, %v1576
        %v1657 = vpack.c.b16 %v1581, %v1579
        %v1658 = vpack.c.b16 %v1582, %v1580
        %v1659 = vpack.c.b16 %v1585, %v1583
        %v1660 = vpack.c.b16 %v1586, %v1584
        %v1661 = vpack.c.b16 %v1589, %v1587
        %v1662 = vpack.c.b16 %v1590, %v1588
        %v1663 = vpack.c.b16 %v1593, %v1591
        %v1664 = vpack.c.b16 %v1594, %v1592
        %v1665 = vpack.c.b16 %v1597, %v1595
        %v1666 = vpack.c.b16 %v1598, %v1596
        %v1667 = vpack.c.b16 %v1601, %v1599
        %v1668 = vpack.c.b16 %v1602, %v1600
        %v1669 = vpack.c.b16 %v1605, %v1603
        %v1670 = vpack.c.b16 %v1606, %v1604
        %1735 = vmatprep.subr.bf16.mxu0 %v1608
        %1736 = vmatpush1.bf16.msra.mxu0 %v1607
        %1737 = vmatprep.subr.bf16.mxu0 %v1610
        %1738 = vmatpush1.bf16.msra.mxu0 %v1609
        %1739 = vmatprep.subr.bf16.mxu0 %v1612
        %1740 = vmatpush1.bf16.msra.mxu0 %v1611
        %1741 = vmatprep.subr.bf16.mxu0 %v1614
        %1742 = vmatpush1.bf16.msra.mxu0 %v1613
        %1743 = vmatprep.subr.bf16.mxu0 %v1616
        %1744 = vmatpush1.bf16.msra.mxu0 %v1615
        %1745 = vmatprep.subr.bf16.mxu0 %v1618
        %1746 = vmatpush1.bf16.msra.mxu0 %v1617
        %1747 = vmatprep.subr.bf16.mxu0 %v1620
        %1748 = vmatpush1.bf16.msra.mxu0 %v1619
        %1749 = vmatprep.subr.bf16.mxu0 %v1622
        %1750 = vmatpush1.bf16.msra.mxu0 %v1621
        %1751 = vmatprep.subr.bf16.mxu0 %v1624
        %1752 = vmatpush1.bf16.msra.mxu0 %v1623
        %1753 = vmatprep.subr.bf16.mxu0 %v1626
        %1754 = vmatpush1.bf16.msra.mxu0 %v1625
        %1755 = vmatprep.subr.bf16.mxu0 %v1628
        %1756 = vmatpush1.bf16.msra.mxu0 %v1627
        %1757 = vmatprep.subr.bf16.mxu0 %v1630
        %1758 = vmatpush1.bf16.msra.mxu0 %v1629
        %1759 = vmatprep.subr.bf16.mxu0 %v1632
        %1760 = vmatpush1.bf16.msra.mxu0 %v1631
        %1761 = vmatprep.subr.bf16.mxu0 %v1634
        %1762 = vmatpush1.bf16.msra.mxu0 %v1633
        %1763 = vmatprep.subr.bf16.mxu0 %v1636
        %1764 = vmatpush1.bf16.msra.mxu0 %v1635
        %1765 = vmatprep.subr.bf16.mxu0 %v1638
        %1766 = vmatpush1.bf16.msra.mxu0 %v1637
        %1767 = vmatprep.mubr.bf16.mxu0 %v1408
        %1768 = vmatmul.mubr.bf16.gmra.mrb[0].mxu0 %v1407
        %v1769 = vpop.f32.mrb[0].mxu0
        %v1770 = vadd.f32 %v1394, %v1769
        %v1771 = vpop.f32.mrb[0].mxu0
        %v1772 = vadd.f32 %v1398, %v1771
        %v1773 = vpop.f32.mrb[0].mxu0
        %v1774 = vpop.f32.mrb[0].mxu0
        %1775 = vdwg.mxu0
        %1776 = vmatprep.subr.bf16.mxu0 %v1640
        %1777 = vmatpush1.bf16.msra.mxu0 %v1639
        %1778 = vmatprep.subr.bf16.mxu0 %v1642
        %1779 = vmatpush1.bf16.msra.mxu0 %v1641
        %1780 = vmatprep.subr.bf16.mxu0 %v1644
        %1781 = vmatpush1.bf16.msra.mxu0 %v1643
        %1782 = vmatprep.subr.bf16.mxu0 %v1646
        %1783 = vmatpush1.bf16.msra.mxu0 %v1645
        %1784 = vmatprep.subr.bf16.mxu0 %v1648
        %1785 = vmatpush1.bf16.msra.mxu0 %v1647
        %1786 = vmatprep.subr.bf16.mxu0 %v1650
        %1787 = vmatpush1.bf16.msra.mxu0 %v1649
        %1788 = vmatprep.subr.bf16.mxu0 %v1652
        %1789 = vmatpush1.bf16.msra.mxu0 %v1651
        %1790 = vmatprep.subr.bf16.mxu0 %v1654
        %1791 = vmatpush1.bf16.msra.mxu0 %v1653
        %1792 = vmatprep.subr.bf16.mxu0 %v1656
        %1793 = vmatpush1.bf16.msra.mxu0 %v1655
        %1794 = vmatprep.subr.bf16.mxu0 %v1658
        %1795 = vmatpush1.bf16.msra.mxu0 %v1657
        %1796 = vmatprep.subr.bf16.mxu0 %v1660
        %1797 = vmatpush1.bf16.msra.mxu0 %v1659
        %1798 = vmatprep.subr.bf16.mxu0 %v1662
        %1799 = vmatpush1.bf16.msra.mxu0 %v1661
        %1800 = vmatprep.subr.bf16.mxu0 %v1664
        %1801 = vmatpush1.bf16.msra.mxu0 %v1663
        %1802 = vmatprep.subr.bf16.mxu0 %v1666
        %1803 = vmatpush1.bf16.msra.mxu0 %v1665
        %1804 = vmatprep.subr.bf16.mxu0 %v1668
        %1805 = vmatpush1.bf16.msra.mxu0 %v1667
        %1806 = vmatprep.subr.bf16.mxu0 %v1670
        %1807 = vmatpush1.bf16.msra.mxu0 %v1669
        %1808 = vmatprep.mubr.bf16.mxu0 %v1410
        %1809 = vmatmul.mubr.bf16.gmra.mrb[0].mxu0 %v1409
        %v1810 = vpop.f32.mrb[0].mxu0
        %v1811 = vadd.f32 %v1770, %v1810
        %v1812 = vpop.f32.mrb[0].mxu0
        %v1813 = vadd.f32 %v1772, %v1812
        %v1814 = vpop.f32.mrb[0].mxu0
        %v1815 = vpop.f32.mrb[0].mxu0
        %1816 = vdwg.mxu0
        %v1817 = vmax.f32 %v1811, 0.0
        %v1818 = vmax.f32 %v1813, 0.0
        %v1819 = vpack.c.bf16 %v1817, %v1817
        %v1820 = vpack.c.bf16 %v1818, %v1818
        %v1823 = vunpack.c.l.b16 %v1819
        %v1824 = vunpack.c.l.b16 %v1820
        %v1825 = vpack.c.b16 %v1824, %v1823
        %1827 = vst [vmem:[#allocation3] sm:$0xff] %v1825
        %v1828 = vld [vmem:[#allocation3] sm:$0xff]
        %v1829 = vld [vmem:[#allocation10] sm:$0xff]
        %v1830 = vld [vmem:[#allocation10 + $0x8] sm:$0xff]
        %v1831 = vld [vmem:[#allocation10 + $0x10] sm:$0xff]
        %v1832 = vld [vmem:[#allocation10 + $0x18] sm:$0xff]
        %v1833 = vld [vmem:[#allocation10 + $0x20] sm:$0xff]
        %v1834 = vld [vmem:[#allocation10 + $0x28] sm:$0xff]
        %v1835 = vld [vmem:[#allocation10 + $0x30] sm:$0xff]
        %v1836 = vld [vmem:[#allocation10 + $0x38] sm:$0xff]
        %v1837 = vld [vmem:[#allocation10 + $0x40] sm:$0xff]
        %v1838 = vld [vmem:[#allocation10 + $0x48] sm:$0xff]
        %v1839 = vld [vmem:[#allocation10 + $0x50] sm:$0xff]
        %v1840 = vld [vmem:[#allocation10 + $0x58] sm:$0xff]
        %v1841 = vld [vmem:[#allocation10 + $0x60] sm:$0xff]
        %v1842 = vld [vmem:[#allocation10 + $0x68] sm:$0xff]
        %v1843 = vld [vmem:[#allocation10 + $0x70] sm:$0xff]
        %v1844 = vld [vmem:[#allocation10 + $0x78] sm:$0xff]
        %v1845 = vld [vmem:[#allocation10 + $0x80] sm:$0xff]
        %v1846 = vld [vmem:[#allocation10 + $0x88] sm:$0xff]
        %v1847 = vld [vmem:[#allocation10 + $0x90] sm:$0xff]
        %v1848 = vld [vmem:[#allocation10 + $0x98] sm:$0xff]
        %v1849 = vld [vmem:[#allocation10 + $0xa0] sm:$0xff]
        %v1850 = vld [vmem:[#allocation10 + $0xa8] sm:$0xff]
        %v1851 = vld [vmem:[#allocation10 + $0xb0] sm:$0xff]
        %v1852 = vld [vmem:[#allocation10 + $0xb8] sm:$0xff]
        %v1853 = vld [vmem:[#allocation10 + $0xc0] sm:$0xff]
        %v1854 = vld [vmem:[#allocation10 + $0xc8] sm:$0xff]
        %v1855 = vld [vmem:[#allocation10 + $0xd0] sm:$0xff]
        %v1856 = vld [vmem:[#allocation10 + $0xd8] sm:$0xff]
        %v1857 = vld [vmem:[#allocation10 + $0xe0] sm:$0xff]
        %v1858 = vld [vmem:[#allocation10 + $0xe8] sm:$0xff]
        %v1859 = vld [vmem:[#allocation10 + $0xf0] sm:$0xff]
        %v1860 = vld [vmem:[#allocation10 + $0xf8] sm:$0xff]
        %v1861 = vld [vmem:[%s6] sm:$0x3]
        %v1863 = vlaneseq
        %v1864 = vshrl.u32 %v1863, 7
        %v1865 = vsub.s32 0, %v1864
        %v1866 = vrot.slane %v1861, %v1865
        %v1867 = vlaneseq
        %v1868 = vshrl.u32 %v1867, 7
        %v1869 = vsub.s32 1, %v1868
        %v1870 = vrot.slane %v1861, %v1869
        %v1874 = vunpack.c.l.b16 %v1828
        %v1875 = vunpack.c.h.b16 %v1828
        %v1876 = vpack.c.b16 %v1874, %v1874
        %v1877 = vpack.c.b16 %v1875, %v1875
        %v1912 = vunpack.c.l.b16 %v1829
        %v1913 = vunpack.c.h.b16 %v1829
        %v1914 = vunpack.c.l.b16 %v1830
        %v1915 = vunpack.c.h.b16 %v1830
        %v1916 = vunpack.c.l.b16 %v1831
        %v1917 = vunpack.c.h.b16 %v1831
        %v1918 = vunpack.c.l.b16 %v1832
        %v1919 = vunpack.c.h.b16 %v1832
        %v1920 = vunpack.c.l.b16 %v1833
        %v1921 = vunpack.c.h.b16 %v1833
        %v1922 = vunpack.c.l.b16 %v1834
        %v1923 = vunpack.c.h.b16 %v1834
        %v1924 = vunpack.c.l.b16 %v1835
        %v1925 = vunpack.c.h.b16 %v1835
        %v1926 = vunpack.c.l.b16 %v1836
        %v1927 = vunpack.c.h.b16 %v1836
        %v1928 = vunpack.c.l.b16 %v1837
        %v1929 = vunpack.c.h.b16 %v1837
        %v1930 = vunpack.c.l.b16 %v1838
        %v1931 = vunpack.c.h.b16 %v1838
        %v1932 = vunpack.c.l.b16 %v1839
        %v1933 = vunpack.c.h.b16 %v1839
        %v1934 = vunpack.c.l.b16 %v1840
        %v1935 = vunpack.c.h.b16 %v1840
        %v1936 = vunpack.c.l.b16 %v1841
        %v1937 = vunpack.c.h.b16 %v1841
        %v1938 = vunpack.c.l.b16 %v1842
        %v1939 = vunpack.c.h.b16 %v1842
        %v1940 = vunpack.c.l.b16 %v1843
        %v1941 = vunpack.c.h.b16 %v1843
        %v1942 = vunpack.c.l.b16 %v1844
        %v1943 = vunpack.c.h.b16 %v1844
        %v1944 = vunpack.c.l.b16 %v1845
        %v1945 = vunpack.c.h.b16 %v1845
        %v1946 = vunpack.c.l.b16 %v1846
        %v1947 = vunpack.c.h.b16 %v1846
        %v1948 = vunpack.c.l.b16 %v1847
        %v1949 = vunpack.c.h.b16 %v1847
        %v1950 = vunpack.c.l.b16 %v1848
        %v1951 = vunpack.c.h.b16 %v1848
        %v1952 = vunpack.c.l.b16 %v1849
        %v1953 = vunpack.c.h.b16 %v1849
        %v1954 = vunpack.c.l.b16 %v1850
        %v1955 = vunpack.c.h.b16 %v1850
        %v1956 = vunpack.c.l.b16 %v1851
        %v1957 = vunpack.c.h.b16 %v1851
        %v1958 = vunpack.c.l.b16 %v1852
        %v1959 = vunpack.c.h.b16 %v1852
        %v1960 = vunpack.c.l.b16 %v1853
        %v1961 = vunpack.c.h.b16 %v1853
        %v1962 = vunpack.c.l.b16 %v1854
        %v1963 = vunpack.c.h.b16 %v1854
        %v1964 = vunpack.c.l.b16 %v1855
        %v1965 = vunpack.c.h.b16 %v1855
        %v1966 = vunpack.c.l.b16 %v1856
        %v1967 = vunpack.c.h.b16 %v1856
        %v1968 = vunpack.c.l.b16 %v1857
        %v1969 = vunpack.c.h.b16 %v1857
        %v1970 = vunpack.c.l.b16 %v1858
        %v1971 = vunpack.c.h.b16 %v1858
        %v1972 = vunpack.c.l.b16 %v1859
        %v1973 = vunpack.c.h.b16 %v1859
        %v1974 = vunpack.c.l.b16 %v1860
        %v1975 = vunpack.c.h.b16 %v1860
        %v1976 = vpack.c.b16 %v1914, %v1912
        %v1977 = vpack.c.b16 %v1915, %v1913
        %v1978 = vpack.c.b16 %v1918, %v1916
        %v1979 = vpack.c.b16 %v1919, %v1917
        %v1980 = vpack.c.b16 %v1922, %v1920
        %v1981 = vpack.c.b16 %v1923, %v1921
        %v1982 = vpack.c.b16 %v1926, %v1924
        %v1983 = vpack.c.b16 %v1927, %v1925
        %v1984 = vpack.c.b16 %v1930, %v1928
        %v1985 = vpack.c.b16 %v1931, %v1929
        %v1986 = vpack.c.b16 %v1934, %v1932
        %v1987 = vpack.c.b16 %v1935, %v1933
        %v1988 = vpack.c.b16 %v1938, %v1936
        %v1989 = vpack.c.b16 %v1939, %v1937
        %v1990 = vpack.c.b16 %v1942, %v1940
        %v1991 = vpack.c.b16 %v1943, %v1941
        %v1992 = vpack.c.b16 %v1946, %v1944
        %v1993 = vpack.c.b16 %v1947, %v1945
        %v1994 = vpack.c.b16 %v1950, %v1948
        %v1995 = vpack.c.b16 %v1951, %v1949
        %v1996 = vpack.c.b16 %v1954, %v1952
        %v1997 = vpack.c.b16 %v1955, %v1953
        %v1998 = vpack.c.b16 %v1958, %v1956
        %v1999 = vpack.c.b16 %v1959, %v1957
        %v2000 = vpack.c.b16 %v1962, %v1960
        %v2001 = vpack.c.b16 %v1963, %v1961
        %v2002 = vpack.c.b16 %v1966, %v1964
        %v2003 = vpack.c.b16 %v1967, %v1965
        %v2004 = vpack.c.b16 %v1970, %v1968
        %v2005 = vpack.c.b16 %v1971, %v1969
        %v2006 = vpack.c.b16 %v1974, %v1972
        %v2007 = vpack.c.b16 %v1975, %v1973
        %2040 = vmatprep.subr.bf16.mxu0 %v1977
        %2041 = vmatpush1.bf16.msra.mxu0 %v1976
        %2042 = vmatprep.subr.bf16.mxu0 %v1979
        %2043 = vmatpush1.bf16.msra.mxu0 %v1978
        %2044 = vmatprep.subr.bf16.mxu0 %v1981
        %2045 = vmatpush1.bf16.msra.mxu0 %v1980
        %2046 = vmatprep.subr.bf16.mxu0 %v1983
        %2047 = vmatpush1.bf16.msra.mxu0 %v1982
        %2048 = vmatprep.subr.bf16.mxu0 %v1985
        %2049 = vmatpush1.bf16.msra.mxu0 %v1984
        %2050 = vmatprep.subr.bf16.mxu0 %v1987
        %2051 = vmatpush1.bf16.msra.mxu0 %v1986
        %2052 = vmatprep.subr.bf16.mxu0 %v1989
        %2053 = vmatpush1.bf16.msra.mxu0 %v1988
        %2054 = vmatprep.subr.bf16.mxu0 %v1991
        %2055 = vmatpush1.bf16.msra.mxu0 %v1990
        %2056 = vmatprep.subr.bf16.mxu0 %v1993
        %2057 = vmatpush1.bf16.msra.mxu0 %v1992
        %2058 = vmatprep.subr.bf16.mxu0 %v1995
        %2059 = vmatpush1.bf16.msra.mxu0 %v1994
        %2060 = vmatprep.subr.bf16.mxu0 %v1997
        %2061 = vmatpush1.bf16.msra.mxu0 %v1996
        %2062 = vmatprep.subr.bf16.mxu0 %v1999
        %2063 = vmatpush1.bf16.msra.mxu0 %v1998
        %2064 = vmatprep.subr.bf16.mxu0 %v2001
        %2065 = vmatpush1.bf16.msra.mxu0 %v2000
        %2066 = vmatprep.subr.bf16.mxu0 %v2003
        %2067 = vmatpush1.bf16.msra.mxu0 %v2002
        %2068 = vmatprep.subr.bf16.mxu0 %v2005
        %2069 = vmatpush1.bf16.msra.mxu0 %v2004
        %2070 = vmatprep.subr.bf16.mxu0 %v2007
        %2071 = vmatpush1.bf16.msra.mxu0 %v2006
        %2072 = vmatprep.mubr.bf16.mxu0 %v1877
        %2073 = vmatmul.mubr.bf16.gmra.mrb[0].mxu0 %v1876
        %v2074 = vpop.f32.mrb[0].mxu0
        %v2075 = vadd.f32 %v1866, %v2074
        %v2076 = vpop.f32.mrb[0].mxu0
        %v2077 = vadd.f32 %v1870, %v2076
        %v2078 = vpop.f32.mrb[0].mxu0
        %v2079 = vpop.f32.mrb[0].mxu0
        %2080 = vdwg.mxu0
        %2081 = vst [vmem:[%s338] sm:$0xff] %v2075
        %2082 = vst [vmem:[%s338 + $0x8] sm:$0xff] %v2077
        %s2083 = sand.u32 %s186, 1
        %s2084 = scalar_lea.sflag [#allocation6], %s2083
        %s2085 = sand.u32 %s186, 1
        %s2086 = smul.addr %s2085, 16
        %s2087 = scalar_lea.vmem [#allocation12], %s2086
        // Predicated region
        $region65: #{tpu_custom_call.1} parent=47 // pred_check
          %p2088 = pneg %p196
        $region66: #{tpu_custom_call.1} parent=47 // pred_check_branch
          %2090 = sbr.rel (%p2088) target = $region68
        $region67: #{tpu_custom_call.1} parent=47 // pred_region
          %s2092 = ssub.s32 256, 256
          %2093 = vsyncadd %s2084, %s2092
          %s2094 = smul.addr %s26, 2
          %s2095 = smul.addr %s2094, 128
          %s2096 = scalar_lea.hbm %s7, %s2095
          %s2098 = sshll.u32 %s2087, 4
          %s2099 = int_to_ptr.vmem [resolvable:$true] %s2098
          %2101 = dma.vmem_to_hbm [thread:$0]  %s2099, 256, %s2096, %s2084
        $region68: #{tpu_custom_call.1} parent=47 // pred_fallthru
          _
      $region48: #{tpu_custom_call.1} parent=5 // pred_fallthru
        _
      %p2102 = scmp.le.s32.totalorder 2, %s21
      // Predicated region
      $region69: #{tpu_custom_call.1} parent=5 // pred_check
        %p2103 = pneg %p2102
      $region70: #{tpu_custom_call.1} parent=5 // pred_check_branch
        %2105 = sbr.rel (%p2103) target = $region72
      $region71: #{tpu_custom_call.1} parent=5 // pred_region
        %s2106 = ssub.s32 %s21, 2
        // Predicated region
        $region73: #{tpu_custom_call.1} parent=71 // pred_check
          %p2107 = pneg %p202
        $region74: #{tpu_custom_call.1} parent=71 // pred_check_branch
          %2109 = sbr.rel (%p2107) target = $region76
        $region75: #{tpu_custom_call.1} parent=71 // pred_region
          %s2110 = sand.u32 %s187, 1
          %s2111 = scalar_lea.sflag [#allocation6], %s2110
          %s2112 = sand.u32 %s187, 1
          %s2113 = smul.addr %s2112, 16
          %s2114 = scalar_lea.vmem [#allocation12], %s2113
          %2115 = dma.done %s2111, 256
        $region76: #{tpu_custom_call.1} parent=71 // pred_fallthru
          _
      $region72: #{tpu_custom_call.1} parent=5 // pred_fallthru
        _
    $region6: #{tpu_custom_call.1} parent=1 // loop_footer
      %s25 = sadd.s32 1, %s21
    $region7: #{tpu_custom_call.1} parent=1 // loop_footer_branch
      %20 = sbr.rel target = $region3
    $region8: #{tpu_custom_call.1} parent=1 // loop_exit
      _
    %2116 = vsyncpa [#allocation5], 1
    %s2117 = scalar_lea.sflag [#allocation5], 1
    %2118 = vsyncpa %s2117, 1
    %2119 = vsyncpa [#allocation8], 1
    %2120 = vsyncpa [#allocation11], 1
    %2121 = vsyncpa [#allocation6], 1
    %s2122 = scalar_lea.sflag [#allocation6], 1
    %2123 = vsyncpa %s2122, 1

</llo_original>
